<compile_context>
chip_gen: v7x
topology: tpu7x:2x2x1
jax: 0.10.0
libtpu: 0.0.40
codegen_flags: <defaults>
</compile_context>

<pallas_src>
import functools

import jax
import jax.numpy as jnp
import numpy as np
from jax.experimental import pallas as pl
from jax.experimental.pallas import tpu as pltpu

EPS = 1e-5

# Rows of the packed (18, 1024) per-channel parameter slab (zero padded).
_B1, _GA1, _BE1 = 0, 1, 2          # conv1 bias / BN1 gamma / BN1 beta   (64)
_B2, _GA2, _BE2 = 3, 4, 5          # conv2                               (128)
_B3, _GA3, _BE3 = 6, 7, 8          # conv3                               (1024)
_FB1, _BG1, _BB1 = 9, 10, 11       # fc1 bias / bn1 gamma / bn1 beta     (128)
_FB2, _BG2, _BB2 = 12, 13, 14      # fc2                                 (128)
_BT = 15                           # final projection bias               (9)
_SC1, _SH1 = 16, 17                # streaming path: precomputed BN1 scale/shift
_NVEC = 18

_RESIDENT_MAX_ROWS = 2048          # rows (=B*N) handled by the single-step kernel
_TARGET_TILE_ROWS = 1024           # rows per streaming grid step (256-1024 sweet spot)
_MAX_TILE_CLOUDS = 64              # bound on static unroll of per-cloud max/min stores
_VMEM_LIMIT = 48 * 1024 * 1024


def _bn_relu_exact(h, gamma, beta):
    """Training-mode BatchNorm (batch stats, biased variance) + ReLU with exact
    centered statistics over axis 0 (all rows resident)."""
    mu = jnp.mean(h, axis=0, keepdims=True)
    d = h - mu
    var = jnp.mean(d * d, axis=0, keepdims=True)
    return jnp.maximum(d * (gamma * jax.lax.rsqrt(var + EPS)) + beta, 0.0)


# ----------------------------------------------------------------------------
# Path 1: fully VMEM-resident single-step kernel (small / medium B*N)
# ----------------------------------------------------------------------------
def tnet3_resident_kernel(x_ref, vec_ref, w1_ref, w2_ref, w3_ref, fw1_ref,
                          fw2_ref, wt_ref, out_ref, *, batch, n_pts):
    f32, bf16 = jnp.float32, jnp.bfloat16

    def vec(row, width):                      # (1, width) slice of the packed slab
        return vec_ref[row:row + 1, 0:width]

    # conv1 -> BN1 -> ReLU      (rows = B*N, channels last)
    h = jnp.dot(x_ref[...], w1_ref[...], preferred_element_type=f32) + vec(_B1, 64)
    h = _bn_relu_exact(h, vec(_GA1, 64), vec(_BE1, 64))
    # conv2 -> BN2 -> ReLU
    h = jnp.dot(h.astype(bf16), w2_ref[...], preferred_element_type=f32) + vec(_B2, 128)
    h = _bn_relu_exact(h, vec(_GA2, 128), vec(_BE2, 128))
    # conv3 -> BN3 -> ReLU
    h = jnp.dot(h.astype(bf16), w3_ref[...], preferred_element_type=f32) + vec(_B3, 1024)
    h = _bn_relu_exact(h, vec(_GA3, 1024), vec(_BE3, 1024))
    # max-pool over the points of each cloud
    pooled = jnp.max(h.reshape(batch, n_pts, 1024), axis=1)              # (B, 1024)
    # fc head
    g = (jnp.dot(pooled.astype(bf16), fw1_ref[...], preferred_element_type=f32)
         + vec(_FB1, 128))
    g = _bn_relu_exact(g, vec(_BG1, 128), vec(_BB1, 128))
    g = jnp.dot(g, fw2_ref[...], preferred_element_type=f32) + vec(_FB2, 128)
    g = _bn_relu_exact(g, vec(_BG2, 128), vec(_BB2, 128))
    out_ref[...] = jnp.dot(g, wt_ref[...], preferred_element_type=f32) + vec(_BT, 9)


# ----------------------------------------------------------------------------
# Path 2: 2-pass streaming kernel (large B*N), `tile_clouds` clouds per step
# ----------------------------------------------------------------------------
def tnet3_streaming_kernel(x_ref, vec_ref, w1_ref, w2_ref, w3_ref, fw1_ref,
                           fw2_ref, wt_ref, out_ref,
                           s2_ref, s3_ref, f2_ref, mx_ref, mn_ref,
                           *, n_rows, tile_clouds, n_pts):
    p = pl.program_id(0)                     # pass: 0 = BN2 stats, 1 = BN3 + pool
    t = pl.program_id(1)                     # tile of `tile_clouds` point clouds
    last_t = pl.num_programs(1) - 1
    inv_n = 1.0 / n_rows
    f32, bf16 = jnp.float32, jnp.bfloat16

    def vec(row, width):
        return vec_ref[row:row + 1, 0:width]

    @pl.when((p == 0) & (t == 0))
    def _init():
        s2_ref[...] = jnp.zeros_like(s2_ref)
        s3_ref[...] = jnp.zeros_like(s3_ref)

    @pl.when((p == 1) & (t == 0))
    def _finalize_bn2():
        # TODO(synk): E[h^2]-mu^2 in f32 can cancel for very large B*N with
        #             |mean| >> std; switch to a Welford/Chan per-tile merge.
        mu = s2_ref[0:1, :] * inv_n
        var = jnp.maximum(s2_ref[1:2, :] * inv_n - mu * mu, 0.0)
        sc = vec(_GA2, 128) * jax.lax.rsqrt(var + EPS)
        f2_ref[0:1, :] = sc
        f2_ref[1:2, :] = vec(_BE2, 128) - mu * sc

    # conv1 -> BN1(precomputed scale/shift) -> ReLU -> conv2, shared by both
    # passes.  conv1/conv2 are deliberately recomputed in pass 1: ~16 KFLOP/row
    # of recompute beats ~512 B/row of extra HBM traffic on every generation.
    x = x_ref[...]                                                    # (rows, 3)
    h1 = jnp.dot(x, w1_ref[...], preferred_element_type=f32) + vec(_B1, 64)
    h1 = jnp.maximum(h1 * vec(_SC1, 64) + vec(_SH1, 64), 0.0)
    h2p = (jnp.dot(h1.astype(bf16), w2_ref[...], preferred_element_type=f32)
           + vec(_B2, 128))

    @pl.when(p == 0)                         # pass 0: BN2 statistics
    def _pass0():
        s2_ref[0:1, :] += jnp.sum(h2p, axis=0, keepdims=True)
        s2_ref[1:2, :] += jnp.sum(h2p * h2p, axis=0, keepdims=True)

    @pl.when(p == 1)                         # pass 1: BN3 stats + per-cloud extrema
    def _pass1():
        h2 = jnp.maximum(h2p * f2_ref[0:1, :] + f2_ref[1:2, :], 0.0)
        h3p = (jnp.dot(h2.astype(bf16), w3_ref[...], preferred_element_type=f32)
               + vec(_B3, 1024))
        s3_ref[0:1, :] += jnp.sum(h3p, axis=0, keepdims=True)
        s3_ref[1:2, :] += jnp.sum(h3p * h3p, axis=0, keepdims=True)
        h3t = h3p.reshape(tile_clouds, n_pts, 1024)
        mxv = jnp.max(h3t, axis=1)                                    # (TB, 1024)
        mnv = jnp.min(h3t, axis=1)
        base = t * tile_clouds
        for c in range(tile_clouds):          # static unroll; single-row dyn stores
            mx_ref[pl.ds(base + c, 1), :] = mxv[c:c + 1, :]
            mn_ref[pl.ds(base + c, 1), :] = mnv[c:c + 1, :]

    @pl.when((p == 1) & (t == last_t))        # epilogue: BN3 + pool + fc head, once
    def _head():
        mu3 = s3_ref[0:1, :] * inv_n
        var3 = jnp.maximum(s3_ref[1:2, :] * inv_n - mu3 * mu3, 0.0)
        sc3 = vec(_GA3, 1024) * jax.lax.rsqrt(var3 + EPS)
        sh3 = vec(_BE3, 1024) - mu3 * sc3
        # relu(bn3(.)) is monotone per channel => the pooled max over points is
        # max over {affine(max_h), affine(min_h)} of the streamed extrema.
        pooled = jnp.maximum(jnp.maximum(mx_ref[...] * sc3 + sh3, 0.0),
                             jnp.maximum(mn_ref[...] * sc3 + sh3, 0.0))  # (B,1024)
        g = (jnp.dot(pooled.astype(bf16), fw1_ref[...], preferred_element_type=f32)
             + vec(_FB1, 128))
        g = _bn_relu_exact(g, vec(_BG1, 128), vec(_BB1, 128))
        g = jnp.dot(g, fw2_ref[...], preferred_element_type=f32) + vec(_FB2, 128)
        g = _bn_relu_exact(g, vec(_BG2, 128), vec(_BB2, 128))
        out_ref[...] = (jnp.dot(g, wt_ref[...], preferred_element_type=f32)
                        + vec(_BT, 9))


# ----------------------------------------------------------------------------
# Parameter packing and wrappers
# ----------------------------------------------------------------------------
def pack_params(params):
    """One (18,1024) f32 slab for all per-channel vectors (one DMA instead of
    ~20 tiny ones); bf16 storage for the large matmul weights (MXU fast path)."""
    (w1, b1, ga1, be1, w2, b2, ga2, be2, w3, b3, ga3, be3,
     fw1, fb1, bg1, bb1, fw2, fb2, bg2, bb2, wt, bt) = params
    rows = [b1, ga1, be1, b2, ga2, be2, b3, ga3, be3,
            fb1, bg1, bb1, fb2, bg2, bb2, bt]
    vecs = np.zeros((_NVEC, 1024), np.float32)
    for i, v in enumerate(rows):
        v = np.asarray(v, np.float32).reshape(-1)
        vecs[i, :v.shape[0]] = v
    # rows _SC1/_SH1 are filled by the streaming wrapper (analytic BN1 stats).
    bf16 = jnp.bfloat16
    return (jnp.asarray(vecs),
            jnp.asarray(w1, jnp.float32),
            jnp.asarray(w2).astype(bf16),
            jnp.asarray(w3).astype(bf16),
            jnp.asarray(fw1).astype(bf16),
            jnp.asarray(fw2, jnp.float32),
            jnp.asarray(wt, jnp.float32))


def _bn1_scale_shift(x2, w1, b1, ga1, be1):
    """Exact training-mode BN1 scale/shift computed analytically in the wrapper:
    h1 = x @ W1 + b1 is affine in x, so mean(h1) = mean(x) @ W1 + b1 and
    var(h1)_j = w_j^T Cov(x) w_j.  Two tiny XLA reductions over (R, 3)."""
    n = x2.shape[0]
    mean_x = jnp.mean(x2, axis=0, keepdims=True)                      # (1, 3)
    xc = x2 - mean_x
    cov = jnp.dot(xc.T, xc, preferred_element_type=jnp.float32) / n   # (3, 3)
    mu1 = jnp.dot(mean_x, w1, preferred_element_type=jnp.float32) + b1
    var1 = jnp.maximum(jnp.sum(jnp.dot(cov, w1) * w1, axis=0, keepdims=True), 0.0)
    sc1 = ga1 * jax.lax.rsqrt(var1 + EPS)
    sh1 = be1 - mu1 * sc1
    return sc1, sh1


def _full_spec_1(arr):
    return pl.BlockSpec(arr.shape, lambda i: (0, 0))


def _full_spec_2(arr):
    return pl.BlockSpec(arr.shape, lambda p, t: (0, 0))


def _tnet3_resident(x2, consts, batch, n_pts):
    vecs, w1, w2b, w3b, fw1b, fw2, wt = consts
    return pl.pallas_call(
        functools.partial(tnet3_resident_kernel, batch=batch, n_pts=n_pts),
        out_shape=jax.ShapeDtypeStruct((batch, 9), jnp.float32),
        grid_spec=pltpu.PrefetchScalarGridSpec(
            num_scalar_prefetch=0,
            grid=(1,),
            in_specs=[_full_spec_1(x2), _full_spec_1(vecs), _full_spec_1(w1),
                      _full_spec_1(w2b), _full_spec_1(w3b), _full_spec_1(fw1b),
                      _full_spec_1(fw2), _full_spec_1(wt)],
            out_specs=pl.BlockSpec((batch, 9), lambda i: (0, 0))),
        compiler_params=pltpu.CompilerParams(
            dimension_semantics=("arbitrary",),
            vmem_limit_bytes=_VMEM_LIMIT),
    )(x2, vecs, w1, w2b, w3b, fw1b, fw2, wt)


def _tnet3_streaming(x2, consts, batch, n_pts, tile_clouds):
    vecs, w1, w2b, w3b, fw1b, fw2, wt = consts
    n_rows = batch * n_pts
    n_tiles = batch // tile_clouds
    rows_per_tile = tile_clouds * n_pts
    return pl.pallas_call(
        functools.partial(tnet3_streaming_kernel, n_rows=n_rows,
                          tile_clouds=tile_clouds, n_pts=n_pts),
        out_shape=jax.ShapeDtypeStruct((batch, 9), jnp.float32),
        grid_spec=pltpu.PrefetchScalarGridSpec(
            num_scalar_prefetch=0,
            grid=(2, n_tiles),                               # (pass, cloud tile)
            in_specs=[pl.BlockSpec((rows_per_tile, 3), lambda p, t: (t, 0)),
                      _full_spec_2(vecs), _full_spec_2(w1), _full_spec_2(w2b),
                      _full_spec_2(w3b), _full_spec_2(fw1b), _full_spec_2(fw2),
                      _full_spec_2(wt)],
            out_specs=pl.BlockSpec((batch, 9), lambda p, t: (0, 0)),
            scratch_shapes=[
                pltpu.VMEM((2, 128), jnp.float32),       # s2: sum / sumsq (BN2)
                pltpu.VMEM((2, 1024), jnp.float32),      # s3: sum / sumsq (BN3)
                pltpu.VMEM((2, 128), jnp.float32),       # f2: BN2 scale / shift
                pltpu.VMEM((batch, 1024), jnp.float32),  # per-cloud max of pre-BN h3
                pltpu.VMEM((batch, 1024), jnp.float32),  # per-cloud min of pre-BN h3
            ]),
        compiler_params=pltpu.CompilerParams(
            # TODO(synk): v7x megacore -- shard the tile axis across the 2 TCs
            #             and reduce s2/s3/mx/mn partials in a finalize step.
            dimension_semantics=("arbitrary", "arbitrary"),
            vmem_limit_bytes=_VMEM_LIMIT),
    )(x2, vecs, w1, w2b, w3b, fw1b, fw2, wt)


def _choose_tile_clouds(batch, n_pts):
    tb = max(1, min(batch, _TARGET_TILE_ROWS // max(n_pts, 1), _MAX_TILE_CLOUDS))
    while batch % tb:
        tb -= 1
    return tb


def tnet3_forward(x_ncw, params, *, force_streaming=False, tile_clouds=None):
    """x_ncw: (B, 3, N) float32, PyTorch NCW layout. Returns (B, 3, 3)."""
    B, C, N = x_ncw.shape
    assert C == 3
    x2 = jnp.transpose(x_ncw, (0, 2, 1)).reshape(B * N, C).astype(jnp.float32)
    consts = pack_params(params)

    if B * N <= _RESIDENT_MAX_ROWS and not force_streaming:
        out = _tnet3_resident(x2, consts, B, N)
    else:
        # TODO(synk): for a single cloud too large for one tile (huge N), split
        #             clouds across tiles with a running max/min accumulator.
        assert N % 8 == 0, "streaming path needs N to be a multiple of 8"
        if tile_clouds is None:
            tile_clouds = _choose_tile_clouds(B, N)
        assert B % tile_clouds == 0
        vecs, w1, w2b, w3b, fw1b, fw2, wt = consts
        f32 = jnp.float32
        sc1, sh1 = _bn1_scale_shift(
            x2, w1,
            jnp.asarray(params[1], f32).reshape(1, -1),
            jnp.asarray(params[2], f32).reshape(1, -1),
            jnp.asarray(params[3], f32).reshape(1, -1))
        vecs = vecs.at[_SC1, :64].set(sc1.reshape(-1))
        vecs = vecs.at[_SH1, :64].set(sh1.reshape(-1))
        consts = (vecs, w1, w2b, w3b, fw1b, fw2, wt)
        out = _tnet3_streaming(x2, consts, B, N, tile_clouds)
    return out.reshape(B, 3, 3)


# ----------------------------------------------------------------------------
# Pure-JAX reference (same precision choices) and synthetic parameters
# ----------------------------------------------------------------------------
def ref_forward(x_ncw, params):
    (w1, b1, ga1, be1, w2, b2, ga2, be2, w3, b3, ga3, be3,
     fw1, fb1, bg1, bb1, fw2, fb2, bg2, bb2, wt, bt) = params
    B, _, N = x_ncw.shape
    x = jnp.transpose(x_ncw, (0, 2, 1)).reshape(B * N, 3).astype(jnp.float32)
    f32, bf16 = jnp.float32, jnp.bfloat16

    def bn(h, g, be_):
        mu = jnp.mean(h, axis=0, keepdims=True)
        var = jnp.mean((h - mu) ** 2, axis=0, keepdims=True)
        return (h - mu) / jnp.sqrt(var + EPS) * g + be_

    def mm(a, b):
        return jnp.dot(a.astype(bf16), b.astype(bf16), preferred_element_type=f32)

    h = jnp.maximum(bn(jnp.dot(x, w1, preferred_element_type=f32) + b1, ga1, be1), 0.0)
    h = jnp.maximum(bn(mm(h, w2) + b2, ga2, be2), 0.0)
    h = jnp.maximum(bn(mm(h, w3) + b3, ga3, be3), 0.0)
    p = jnp.max(h.reshape(B, N, -1), axis=1)
    g1 = jnp.maximum(bn(mm(p, fw1) + fb1, bg1, bb1), 0.0)
    g2 = jnp.maximum(bn(jnp.dot(g1, fw2, preferred_element_type=f32) + fb2,
                        bg2, bb2), 0.0)
    return (jnp.dot(g2, wt, preferred_element_type=f32) + bt).reshape(B, 3, 3)


def init_params(key):
    """Deterministic synthetic parameters with the shapes implied by TNet3.__init__."""
    ks = jax.random.split(key, 16)
    f32 = jnp.float32

    def nrm(k, shape, scale=0.1):
        return (scale * jax.random.normal(k, shape)).astype(f32)

    # conv weights stored transposed (Cin, Cout) so 1x1 conv == x @ W
    w1 = nrm(ks[0], (3, 64));        b1 = nrm(ks[1], (1, 64))
    w2 = nrm(ks[2], (64, 128));      b2 = nrm(ks[3], (1, 128))
    w3 = nrm(ks[4], (128, 1024));    b3 = nrm(ks[5], (1, 1024))
    ga1 = 1.0 + nrm(ks[6], (1, 64));    be1 = nrm(ks[7], (1, 64))
    ga2 = 1.0 + nrm(ks[8], (1, 128));   be2 = nrm(ks[9], (1, 128))
    ga3 = 1.0 + nrm(ks[10], (1, 1024)); be3 = nrm(ks[11], (1, 1024))
    fw1 = nrm(ks[12], (1024, 128));  fb1 = nrm(ks[13], (1, 128))
    bg1 = jnp.ones((1, 128), f32);   bb1 = jnp.zeros((1, 128), f32)
    fw2 = nrm(ks[14], (128, 128));   fb2 = nrm(ks[15], (1, 128))
    bg2 = jnp.ones((1, 128), f32);   bb2 = jnp.zeros((1, 128), f32)
    wt = (0.05 * jax.random.normal(jax.random.fold_in(key, 99), (128, 9))).astype(f32)
    bt = jnp.eye(3, dtype=f32).flatten().reshape(1, 9)
    return (w1, b1, ga1, be1, w2, b2, ga2, be2, w3, b3, ga3, be3,
            fw1, fb1, bg1, bb1, fw2, fb2, bg2, bb2, wt, bt)


if __name__ == "__main__":
    key = jax.random.PRNGKey(0)
    k_x, k_p, k_x2 = jax.random.split(key, 3)
    params = init_params(k_p)

    # Primary path: fully VMEM-resident single-step kernel (B*N = 32 rows).
    B, N = 2, 16
    x = jax.random.normal(k_x, (B, 3, N), dtype=jnp.float32)       # PyTorch NCW
    out = jax.block_until_ready(tnet3_forward(x, params))
    assert out.shape == (B, 3, 3) and out.dtype == jnp.float32
    ref = jax.block_until_ready(ref_forward(x, params))
    np.testing.assert_allclose(np.asarray(out), np.asarray(ref),
                               rtol=1e-2, atol=1e-2)

    # Fallback path: 2-pass streaming kernel (forced; 2 clouds/tile, 2 tiles).
    B2, N2 = 4, 64
    x_big = jax.random.normal(k_x2, (B2, 3, N2), dtype=jnp.float32)
    out2 = jax.block_until_ready(
        tnet3_forward(x_big, params, force_streaming=True, tile_clouds=2))
    assert out2.shape == (B2, 3, 3)
    ref2 = jax.block_until_ready(ref_forward(x_big, params))
    np.testing.assert_allclose(np.asarray(out2), np.asarray(ref2),
                               rtol=1e-2, atol=1e-2)

    print("KERNEL_OK")
</pallas_src>

<mosaic_0001>
module attributes {stable_mosaic.version = 11 : i64} {
  func.func @tnet3_resident_kernel(%arg0: i32, %arg1: memref<32x3xf32, #tpu.memory_space<vmem>>, %arg2: memref<18x1024xf32, #tpu.memory_space<vmem>>, %arg3: memref<3x64xf32, #tpu.memory_space<vmem>>, %arg4: memref<64x128xbf16, #tpu.memory_space<vmem>>, %arg5: memref<128x1024xbf16, #tpu.memory_space<vmem>>, %arg6: memref<1024x128xbf16, #tpu.memory_space<vmem>>, %arg7: memref<128x128xf32, #tpu.memory_space<vmem>>, %arg8: memref<128x9xf32, #tpu.memory_space<vmem>>, %arg9: memref<2x9xf32, #tpu.memory_space<vmem>>) attributes {dimension_semantics = [#tpu.dimension_semantics<arbitrary>], iteration_bounds = array<i64: 1>, scalar_prefetch = 0 : i64, scratch_operands = 0 : i64, tpu.core_type = #tpu.core_type<tc>, window_params = [{pipeline_mode = #tpu.pipeline_mode<synchronous>, transform_indices = @transform_0, window_bounds = array<i64: 32, 3>}, {pipeline_mode = #tpu.pipeline_mode<synchronous>, transform_indices = @transform_1, window_bounds = array<i64: 18, 1024>}, {pipeline_mode = #tpu.pipeline_mode<synchronous>, transform_indices = @transform_2, window_bounds = array<i64: 3, 64>}, {pipeline_mode = #tpu.pipeline_mode<synchronous>, transform_indices = @transform_3, window_bounds = array<i64: 64, 128>}, {pipeline_mode = #tpu.pipeline_mode<synchronous>, transform_indices = @transform_4, window_bounds = array<i64: 128, 1024>}, {pipeline_mode = #tpu.pipeline_mode<synchronous>, transform_indices = @transform_5, window_bounds = array<i64: 1024, 128>}, {pipeline_mode = #tpu.pipeline_mode<synchronous>, transform_indices = @transform_6, window_bounds = array<i64: 128, 128>}, {pipeline_mode = #tpu.pipeline_mode<synchronous>, transform_indices = @transform_7, window_bounds = array<i64: 128, 9>}, {pipeline_mode = #tpu.pipeline_mode<synchronous>, transform_indices = @transform_8, window_bounds = array<i64: 2, 9>}]} {
    %c0 = arith.constant 0 : index
    %c0_0 = arith.constant 0 : index
    %0 = vector.load %arg1[%c0, %c0_0] : memref<32x3xf32, #tpu.memory_space<vmem>>, vector<32x3xf32>
    %c0_1 = arith.constant 0 : index
    %c0_2 = arith.constant 0 : index
    %1 = vector.load %arg3[%c0_1, %c0_2] : memref<3x64xf32, #tpu.memory_space<vmem>>, vector<3x64xf32>
    %cst = arith.constant dense<0.000000e+00> : vector<32x64xf32>
    %2 = tpu.matmul %0, %1, %cst {dimension_numbers = #tpu.dot_dimension_numbers<[1], [0], [0], [1], [0, 0, 1, 1], [], []>} : vector<32x3xf32>, vector<3x64xf32>, vector<32x64xf32> -> vector<32x64xf32>
    %c0_3 = arith.constant 0 : index
    %c0_4 = arith.constant 0 : index
    %3 = vector.load %arg2[%c0_3, %c0_4] : memref<18x1024xf32, #tpu.memory_space<vmem>>, vector<1x64xf32>
    %4 = vector.broadcast %3 : vector<1x64xf32> to vector<32x64xf32>
    %5 = arith.addf %2, %4 : vector<32x64xf32>
    %c1 = arith.constant 1 : index
    %c0_5 = arith.constant 0 : index
    %6 = vector.load %arg2[%c1, %c0_5] : memref<18x1024xf32, #tpu.memory_space<vmem>>, vector<1x64xf32>
    %c2 = arith.constant 2 : index
    %c0_6 = arith.constant 0 : index
    %7 = vector.load %arg2[%c2, %c0_6] : memref<18x1024xf32, #tpu.memory_space<vmem>>, vector<1x64xf32>
    %cst_7 = arith.constant dense<0.000000e+00> : vector<64xf32>
    %8 = vector.multi_reduction <add>, %5, %cst_7 [0] : vector<32x64xf32> to vector<64xf32>
    %9 = vector.shape_cast %8 : vector<64xf32> to vector<1x64xf32>
    %cst_8 = arith.constant 3.200000e+01 : f32
    %10 = vector.broadcast %cst_8 : f32 to vector<1x64xf32>
    %11 = arith.divf %9, %10 : vector<1x64xf32>
    %12 = vector.broadcast %11 : vector<1x64xf32> to vector<32x64xf32>
    %13 = arith.subf %5, %12 : vector<32x64xf32>
    %14 = arith.mulf %13, %13 : vector<32x64xf32>
    %cst_9 = arith.constant dense<0.000000e+00> : vector<64xf32>
    %15 = vector.multi_reduction <add>, %14, %cst_9 [0] : vector<32x64xf32> to vector<64xf32>
    %16 = vector.shape_cast %15 : vector<64xf32> to vector<1x64xf32>
    %cst_10 = arith.constant 3.200000e+01 : f32
    %17 = vector.broadcast %cst_10 : f32 to vector<1x64xf32>
    %18 = arith.divf %16, %17 : vector<1x64xf32>
    %cst_11 = arith.constant 9.99999974E-6 : f32
    %19 = vector.broadcast %cst_11 : f32 to vector<1x64xf32>
    %20 = arith.addf %18, %19 : vector<1x64xf32>
    %21 = math.rsqrt %20 : vector<1x64xf32>
    %22 = arith.mulf %6, %21 : vector<1x64xf32>
    %23 = vector.broadcast %22 : vector<1x64xf32> to vector<32x64xf32>
    %24 = arith.mulf %13, %23 : vector<32x64xf32>
    %25 = vector.broadcast %7 : vector<1x64xf32> to vector<32x64xf32>
    %26 = arith.addf %24, %25 : vector<32x64xf32>
    %cst_12 = arith.constant 0.000000e+00 : f32
    %27 = vector.broadcast %cst_12 : f32 to vector<32x64xf32>
    %28 = arith.maximumf %26, %27 : vector<32x64xf32>
    %29 = arith.truncf %28 : vector<32x64xf32> to vector<32x64xbf16>
    %c0_13 = arith.constant 0 : index
    %c0_14 = arith.constant 0 : index
    %30 = vector.load %arg4[%c0_13, %c0_14] : memref<64x128xbf16, #tpu.memory_space<vmem>>, vector<64x128xbf16>
    %cst_15 = arith.constant dense<0.000000e+00> : vector<32x128xf32>
    %31 = tpu.matmul %29, %30, %cst_15 {dimension_numbers = #tpu.dot_dimension_numbers<[1], [0], [0], [1], [0, 0, 1, 1], [], []>} : vector<32x64xbf16>, vector<64x128xbf16>, vector<32x128xf32> -> vector<32x128xf32>
    %c3 = arith.constant 3 : index
    %c0_16 = arith.constant 0 : index
    %32 = vector.load %arg2[%c3, %c0_16] : memref<18x1024xf32, #tpu.memory_space<vmem>>, vector<1x128xf32>
    %33 = vector.broadcast %32 : vector<1x128xf32> to vector<32x128xf32>
    %34 = arith.addf %31, %33 : vector<32x128xf32>
    %c4 = arith.constant 4 : index
    %c0_17 = arith.constant 0 : index
    %35 = vector.load %arg2[%c4, %c0_17] : memref<18x1024xf32, #tpu.memory_space<vmem>>, vector<1x128xf32>
    %c5 = arith.constant 5 : index
    %c0_18 = arith.constant 0 : index
    %36 = vector.load %arg2[%c5, %c0_18] : memref<18x1024xf32, #tpu.memory_space<vmem>>, vector<1x128xf32>
    %cst_19 = arith.constant dense<0.000000e+00> : vector<128xf32>
    %37 = vector.multi_reduction <add>, %34, %cst_19 [0] : vector<32x128xf32> to vector<128xf32>
    %38 = vector.shape_cast %37 : vector<128xf32> to vector<1x128xf32>
    %cst_20 = arith.constant 3.200000e+01 : f32
    %39 = vector.broadcast %cst_20 : f32 to vector<1x128xf32>
    %40 = arith.divf %38, %39 : vector<1x128xf32>
    %41 = vector.broadcast %40 : vector<1x128xf32> to vector<32x128xf32>
    %42 = arith.subf %34, %41 : vector<32x128xf32>
    %43 = arith.mulf %42, %42 : vector<32x128xf32>
    %cst_21 = arith.constant dense<0.000000e+00> : vector<128xf32>
    %44 = vector.multi_reduction <add>, %43, %cst_21 [0] : vector<32x128xf32> to vector<128xf32>
    %45 = vector.shape_cast %44 : vector<128xf32> to vector<1x128xf32>
    %cst_22 = arith.constant 3.200000e+01 : f32
    %46 = vector.broadcast %cst_22 : f32 to vector<1x128xf32>
    %47 = arith.divf %45, %46 : vector<1x128xf32>
    %cst_23 = arith.constant 9.99999974E-6 : f32
    %48 = vector.broadcast %cst_23 : f32 to vector<1x128xf32>
    %49 = arith.addf %47, %48 : vector<1x128xf32>
    %50 = math.rsqrt %49 : vector<1x128xf32>
    %51 = arith.mulf %35, %50 : vector<1x128xf32>
    %52 = vector.broadcast %51 : vector<1x128xf32> to vector<32x128xf32>
    %53 = arith.mulf %42, %52 : vector<32x128xf32>
    %54 = vector.broadcast %36 : vector<1x128xf32> to vector<32x128xf32>
    %55 = arith.addf %53, %54 : vector<32x128xf32>
    %cst_24 = arith.constant 0.000000e+00 : f32
    %56 = vector.broadcast %cst_24 : f32 to vector<32x128xf32>
    %57 = arith.maximumf %55, %56 : vector<32x128xf32>
    %58 = arith.truncf %57 : vector<32x128xf32> to vector<32x128xbf16>
    %c0_25 = arith.constant 0 : index
    %c0_26 = arith.constant 0 : index
    %59 = vector.load %arg5[%c0_25, %c0_26] : memref<128x1024xbf16, #tpu.memory_space<vmem>>, vector<128x1024xbf16>
    %cst_27 = arith.constant dense<0.000000e+00> : vector<32x1024xf32>
    %60 = tpu.matmul %58, %59, %cst_27 {dimension_numbers = #tpu.dot_dimension_numbers<[1], [0], [0], [1], [0, 0, 1, 1], [], []>} : vector<32x128xbf16>, vector<128x1024xbf16>, vector<32x1024xf32> -> vector<32x1024xf32>
    %c6 = arith.constant 6 : index
    %c0_28 = arith.constant 0 : index
    %61 = vector.load %arg2[%c6, %c0_28] : memref<18x1024xf32, #tpu.memory_space<vmem>>, vector<1x1024xf32>
    %62 = vector.broadcast %61 : vector<1x1024xf32> to vector<32x1024xf32>
    %63 = arith.addf %60, %62 : vector<32x1024xf32>
    %c7 = arith.constant 7 : index
    %c0_29 = arith.constant 0 : index
    %64 = vector.load %arg2[%c7, %c0_29] : memref<18x1024xf32, #tpu.memory_space<vmem>>, vector<1x1024xf32>
    %c8 = arith.constant 8 : index
    %c0_30 = arith.constant 0 : index
    %65 = vector.load %arg2[%c8, %c0_30] : memref<18x1024xf32, #tpu.memory_space<vmem>>, vector<1x1024xf32>
    %cst_31 = arith.constant dense<0.000000e+00> : vector<1024xf32>
    %66 = vector.multi_reduction <add>, %63, %cst_31 [0] : vector<32x1024xf32> to vector<1024xf32>
    %67 = vector.shape_cast %66 : vector<1024xf32> to vector<1x1024xf32>
    %cst_32 = arith.constant 3.200000e+01 : f32
    %68 = vector.broadcast %cst_32 : f32 to vector<1x1024xf32>
    %69 = arith.divf %67, %68 : vector<1x1024xf32>
    %70 = vector.broadcast %69 : vector<1x1024xf32> to vector<32x1024xf32>
    %71 = arith.subf %63, %70 : vector<32x1024xf32>
    %72 = arith.mulf %71, %71 : vector<32x1024xf32>
    %cst_33 = arith.constant dense<0.000000e+00> : vector<1024xf32>
    %73 = vector.multi_reduction <add>, %72, %cst_33 [0] : vector<32x1024xf32> to vector<1024xf32>
    %74 = vector.shape_cast %73 : vector<1024xf32> to vector<1x1024xf32>
    %cst_34 = arith.constant 3.200000e+01 : f32
    %75 = vector.broadcast %cst_34 : f32 to vector<1x1024xf32>
    %76 = arith.divf %74, %75 : vector<1x1024xf32>
    %cst_35 = arith.constant 9.99999974E-6 : f32
    %77 = vector.broadcast %cst_35 : f32 to vector<1x1024xf32>
    %78 = arith.addf %76, %77 : vector<1x1024xf32>
    %79 = math.rsqrt %78 : vector<1x1024xf32>
    %80 = arith.mulf %64, %79 : vector<1x1024xf32>
    %81 = vector.broadcast %80 : vector<1x1024xf32> to vector<32x1024xf32>
    %82 = arith.mulf %71, %81 : vector<32x1024xf32>
    %83 = vector.broadcast %65 : vector<1x1024xf32> to vector<32x1024xf32>
    %84 = arith.addf %82, %83 : vector<32x1024xf32>
    %cst_36 = arith.constant 0.000000e+00 : f32
    %85 = vector.broadcast %cst_36 : f32 to vector<32x1024xf32>
    %86 = arith.maximumf %84, %85 : vector<32x1024xf32>
    %87 = vector.shape_cast %86 : vector<32x1024xf32> to vector<2x16x1024xf32>
    %cst_37 = arith.constant dense<0xFF800000> : vector<2x1024xf32>
    %88 = vector.multi_reduction <maximumf>, %87, %cst_37 [1] : vector<2x16x1024xf32> to vector<2x1024xf32>
    %89 = arith.truncf %88 : vector<2x1024xf32> to vector<2x1024xbf16>
    %c0_38 = arith.constant 0 : index
    %c0_39 = arith.constant 0 : index
    %90 = vector.load %arg6[%c0_38, %c0_39] : memref<1024x128xbf16, #tpu.memory_space<vmem>>, vector<1024x128xbf16>
    %cst_40 = arith.constant dense<0.000000e+00> : vector<2x128xf32>
    %91 = tpu.matmul %89, %90, %cst_40 {dimension_numbers = #tpu.dot_dimension_numbers<[1], [0], [0], [1], [0, 0, 1, 1], [], []>} : vector<2x1024xbf16>, vector<1024x128xbf16>, vector<2x128xf32> -> vector<2x128xf32>
    %c9 = arith.constant 9 : index
    %c0_41 = arith.constant 0 : index
    %92 = vector.load %arg2[%c9, %c0_41] : memref<18x1024xf32, #tpu.memory_space<vmem>>, vector<1x128xf32>
    %93 = vector.broadcast %92 : vector<1x128xf32> to vector<2x128xf32>
    %94 = arith.addf %91, %93 : vector<2x128xf32>
    %c10 = arith.constant 10 : index
    %c0_42 = arith.constant 0 : index
    %95 = vector.load %arg2[%c10, %c0_42] : memref<18x1024xf32, #tpu.memory_space<vmem>>, vector<1x128xf32>
    %c11 = arith.constant 11 : index
    %c0_43 = arith.constant 0 : index
    %96 = vector.load %arg2[%c11, %c0_43] : memref<18x1024xf32, #tpu.memory_space<vmem>>, vector<1x128xf32>
    %cst_44 = arith.constant dense<0.000000e+00> : vector<128xf32>
    %97 = vector.multi_reduction <add>, %94, %cst_44 [0] : vector<2x128xf32> to vector<128xf32>
    %98 = vector.shape_cast %97 : vector<128xf32> to vector<1x128xf32>
    %cst_45 = arith.constant 2.000000e+00 : f32
    %99 = vector.broadcast %cst_45 : f32 to vector<1x128xf32>
    %100 = arith.divf %98, %99 : vector<1x128xf32>
    %101 = vector.broadcast %100 : vector<1x128xf32> to vector<2x128xf32>
    %102 = arith.subf %94, %101 : vector<2x128xf32>
    %103 = arith.mulf %102, %102 : vector<2x128xf32>
    %cst_46 = arith.constant dense<0.000000e+00> : vector<128xf32>
    %104 = vector.multi_reduction <add>, %103, %cst_46 [0] : vector<2x128xf32> to vector<128xf32>
    %105 = vector.shape_cast %104 : vector<128xf32> to vector<1x128xf32>
    %cst_47 = arith.constant 2.000000e+00 : f32
    %106 = vector.broadcast %cst_47 : f32 to vector<1x128xf32>
    %107 = arith.divf %105, %106 : vector<1x128xf32>
    %cst_48 = arith.constant 9.99999974E-6 : f32
    %108 = vector.broadcast %cst_48 : f32 to vector<1x128xf32>
    %109 = arith.addf %107, %108 : vector<1x128xf32>
    %110 = math.rsqrt %109 : vector<1x128xf32>
    %111 = arith.mulf %95, %110 : vector<1x128xf32>
    %112 = vector.broadcast %111 : vector<1x128xf32> to vector<2x128xf32>
    %113 = arith.mulf %102, %112 : vector<2x128xf32>
    %114 = vector.broadcast %96 : vector<1x128xf32> to vector<2x128xf32>
    %115 = arith.addf %113, %114 : vector<2x128xf32>
    %cst_49 = arith.constant 0.000000e+00 : f32
    %116 = vector.broadcast %cst_49 : f32 to vector<2x128xf32>
    %117 = arith.maximumf %115, %116 : vector<2x128xf32>
    %c0_50 = arith.constant 0 : index
    %c0_51 = arith.constant 0 : index
    %118 = vector.load %arg7[%c0_50, %c0_51] : memref<128x128xf32, #tpu.memory_space<vmem>>, vector<128x128xf32>
    %cst_52 = arith.constant dense<0.000000e+00> : vector<2x128xf32>
    %119 = tpu.matmul %117, %118, %cst_52 {dimension_numbers = #tpu.dot_dimension_numbers<[1], [0], [0], [1], [0, 0, 1, 1], [], []>} : vector<2x128xf32>, vector<128x128xf32>, vector<2x128xf32> -> vector<2x128xf32>
    %c12 = arith.constant 12 : index
    %c0_53 = arith.constant 0 : index
    %120 = vector.load %arg2[%c12, %c0_53] : memref<18x1024xf32, #tpu.memory_space<vmem>>, vector<1x128xf32>
    %121 = vector.broadcast %120 : vector<1x128xf32> to vector<2x128xf32>
    %122 = arith.addf %119, %121 : vector<2x128xf32>
    %c13 = arith.constant 13 : index
    %c0_54 = arith.constant 0 : index
    %123 = vector.load %arg2[%c13, %c0_54] : memref<18x1024xf32, #tpu.memory_space<vmem>>, vector<1x128xf32>
    %c14 = arith.constant 14 : index
    %c0_55 = arith.constant 0 : index
    %124 = vector.load %arg2[%c14, %c0_55] : memref<18x1024xf32, #tpu.memory_space<vmem>>, vector<1x128xf32>
    %cst_56 = arith.constant dense<0.000000e+00> : vector<128xf32>
    %125 = vector.multi_reduction <add>, %122, %cst_56 [0] : vector<2x128xf32> to vector<128xf32>
    %126 = vector.shape_cast %125 : vector<128xf32> to vector<1x128xf32>
    %cst_57 = arith.constant 2.000000e+00 : f32
    %127 = vector.broadcast %cst_57 : f32 to vector<1x128xf32>
    %128 = arith.divf %126, %127 : vector<1x128xf32>
    %129 = vector.broadcast %128 : vector<1x128xf32> to vector<2x128xf32>
    %130 = arith.subf %122, %129 : vector<2x128xf32>
    %131 = arith.mulf %130, %130 : vector<2x128xf32>
    %cst_58 = arith.constant dense<0.000000e+00> : vector<128xf32>
    %132 = vector.multi_reduction <add>, %131, %cst_58 [0] : vector<2x128xf32> to vector<128xf32>
    %133 = vector.shape_cast %132 : vector<128xf32> to vector<1x128xf32>
    %cst_59 = arith.constant 2.000000e+00 : f32
    %134 = vector.broadcast %cst_59 : f32 to vector<1x128xf32>
    %135 = arith.divf %133, %134 : vector<1x128xf32>
    %cst_60 = arith.constant 9.99999974E-6 : f32
    %136 = vector.broadcast %cst_60 : f32 to vector<1x128xf32>
    %137 = arith.addf %135, %136 : vector<1x128xf32>
    %138 = math.rsqrt %137 : vector<1x128xf32>
    %139 = arith.mulf %123, %138 : vector<1x128xf32>
    %140 = vector.broadcast %139 : vector<1x128xf32> to vector<2x128xf32>
    %141 = arith.mulf %130, %140 : vector<2x128xf32>
    %142 = vector.broadcast %124 : vector<1x128xf32> to vector<2x128xf32>
    %143 = arith.addf %141, %142 : vector<2x128xf32>
    %cst_61 = arith.constant 0.000000e+00 : f32
    %144 = vector.broadcast %cst_61 : f32 to vector<2x128xf32>
    %145 = arith.maximumf %143, %144 : vector<2x128xf32>
    %c0_62 = arith.constant 0 : index
    %c0_63 = arith.constant 0 : index
    %146 = vector.load %arg8[%c0_62, %c0_63] : memref<128x9xf32, #tpu.memory_space<vmem>>, vector<128x9xf32>
    %cst_64 = arith.constant dense<0.000000e+00> : vector<2x9xf32>
    %147 = tpu.matmul %145, %146, %cst_64 {dimension_numbers = #tpu.dot_dimension_numbers<[1], [0], [0], [1], [0, 0, 1, 1], [], []>} : vector<2x128xf32>, vector<128x9xf32>, vector<2x9xf32> -> vector<2x9xf32>
    %c15 = arith.constant 15 : index
    %c0_65 = arith.constant 0 : index
    %148 = vector.load %arg2[%c15, %c0_65] : memref<18x1024xf32, #tpu.memory_space<vmem>>, vector<1x9xf32>
    %149 = vector.broadcast %148 : vector<1x9xf32> to vector<2x9xf32>
    %150 = arith.addf %147, %149 : vector<2x9xf32>
    %c0_66 = arith.constant 0 : index
    %c0_67 = arith.constant 0 : index
    %151 = vector.load %arg9[%c0_66, %c0_67] : memref<2x9xf32, #tpu.memory_space<vmem>>, vector<2x9xf32>
    tpu.vector_store %arg9[%c0_66, %c0_67], %150 {strides = array<i32>} : memref<2x9xf32, #tpu.memory_space<vmem>>, vector<2x9xf32>,
    return
  }
  func.func @transform_0(%arg0: i32) -> (i32, i32) {
    %c0_i32 = arith.constant 0 : i32
    %c0_i32_0 = arith.constant 0 : i32
    %c0_i32_1 = arith.constant 0 : i32
    return %c0_i32, %c0_i32_0 : i32, i32
  }
  func.func @transform_1(%arg0: i32) -> (i32, i32) {
    %c0_i32 = arith.constant 0 : i32
    %c0_i32_0 = arith.constant 0 : i32
    %c0_i32_1 = arith.constant 0 : i32
    return %c0_i32, %c0_i32_0 : i32, i32
  }
  func.func @transform_2(%arg0: i32) -> (i32, i32) {
    %c0_i32 = arith.constant 0 : i32
    %c0_i32_0 = arith.constant 0 : i32
    %c0_i32_1 = arith.constant 0 : i32
    return %c0_i32, %c0_i32_0 : i32, i32
  }
  func.func @transform_3(%arg0: i32) -> (i32, i32) {
    %c0_i32 = arith.constant 0 : i32
    %c0_i32_0 = arith.constant 0 : i32
    %c0_i32_1 = arith.constant 0 : i32
    return %c0_i32, %c0_i32_0 : i32, i32
  }
  func.func @transform_4(%arg0: i32) -> (i32, i32) {
    %c0_i32 = arith.constant 0 : i32
    %c0_i32_0 = arith.constant 0 : i32
    %c0_i32_1 = arith.constant 0 : i32
    return %c0_i32, %c0_i32_0 : i32, i32
  }
  func.func @transform_5(%arg0: i32) -> (i32, i32) {
    %c0_i32 = arith.constant 0 : i32
    %c0_i32_0 = arith.constant 0 : i32
    %c0_i32_1 = arith.constant 0 : i32
    return %c0_i32, %c0_i32_0 : i32, i32
  }
  func.func @transform_6(%arg0: i32) -> (i32, i32) {
    %c0_i32 = arith.constant 0 : i32
    %c0_i32_0 = arith.constant 0 : i32
    %c0_i32_1 = arith.constant 0 : i32
    return %c0_i32, %c0_i32_0 : i32, i32
  }
  func.func @transform_7(%arg0: i32) -> (i32, i32) {
    %c0_i32 = arith.constant 0 : i32
    %c0_i32_0 = arith.constant 0 : i32
    %c0_i32_1 = arith.constant 0 : i32
    return %c0_i32, %c0_i32_0 : i32, i32
  }
  func.func @transform_8(%arg0: i32) -> (i32, i32) {
    %c0_i32 = arith.constant 0 : i32
    %c0_i32_0 = arith.constant 0 : i32
    %c0_i32_1 = arith.constant 0 : i32
    return %c0_i32, %c0_i32_0 : i32, i32
  }
}

</mosaic_0001>

<llo_original>
// kernel: tpu_custom_call.1
$region0: #{tpu_custom_call.1}
  #allocation0 [shape = 'u32[]', space=smem, size = 0x4, offset = 0x4, fixed_abs, tag = 'smem constant byte address 0x4 - core index']
  #allocation1 [shape = 'u32[144,128]{1,0:T(1,128)}', space=vmem, size = 0x12000, scoped, tag = 'internal scratch']
  %s0 = inlined_call_operand.vmem [shape: f32[32,3], index: 0, kind: input, shape index: {}]
  %s1 = inlined_call_operand.hbm [shape: f32[18,1024], index: 1, kind: input, shape index: {}]
  %s2 = inlined_call_operand.vmem [shape: f32[3,64], index: 2, kind: input, shape index: {}]
  %s3 = inlined_call_operand.vmem [shape: bf16[64,128], index: 3, kind: input, shape index: {}]
  %s4 = inlined_call_operand.hbm [shape: bf16[128,1024], index: 4, kind: input, shape index: {}]
  %s5 = inlined_call_operand.hbm [shape: bf16[1024,128], index: 5, kind: input, shape index: {}]
  %s6 = inlined_call_operand.vmem [shape: f32[128,128], index: 6, kind: input, shape index: {}]
  %s7 = inlined_call_operand.vmem [shape: f32[128,9], index: 7, kind: input, shape index: {}]
  %s8 = inlined_call_operand.hbm [shape: f32[2,9], index: 8, kind: output, shape index: {}]
  %s9 = sld [smem:[#allocation0]]
  $region54: #{tpu_custom_call.1} parent=0
    _
  %s11 = ssub.s32 1, %s9
  %s12 = scalar_select 0, %s11, %s9
  $region1: #{tpu_custom_call.1} parent=0
    #allocation2 [shape = 'u8[98304]{0}', space=vmem, size = 0x18000, scoped, tag = 'input window, operand 1, single buffered']
    #allocation3 [shape = 's32[1]{0}', space=sflag, size = 0x4, scoped, tag = 'scoped memory for tpu_custom_call.1']
    #allocation4 [shape = 's32[1]{0}', space=sflag, size = 0x4, scoped, tag = 'scoped memory for tpu_custom_call.1']
    #allocation5 [shape = 'u8[262144]{0}', space=vmem, size = 0x40000, scoped, tag = 'input window, operand 4, single buffered']
    #allocation6 [shape = 's32[1]{0}', space=sflag, size = 0x4, scoped, tag = 'scoped memory for tpu_custom_call.1']
    #allocation7 [shape = 'u8[262144]{0}', space=vmem, size = 0x40000, scoped, tag = 'input window, operand 5, single buffered']
    #allocation8 [shape = 'u8[1024]{0}', space=vmem, size = 0x400, scoped, tag = 'output window, operand 0, single buffered']
    %13 = vsyncpa [#allocation3], 0
    %14 = vsyncpa [#allocation6], 0
    %15 = vsyncpa [#allocation4], 0
    // Predicated region
    $region2: #{tpu_custom_call.1} parent=1 // pred_check
      _
    $region3: #{tpu_custom_call.1} parent=1 // pred_check_branch
      %17 = sbr.rel (0) target = $region5
    $region4: #{tpu_custom_call.1} parent=1 // pred_region
      _
    $region5: #{tpu_custom_call.1} parent=1 // pred_fallthru
      _
    // Predicated region
    $region6: #{tpu_custom_call.1} parent=1 // pred_check
      _
    $region7: #{tpu_custom_call.1} parent=1 // pred_check_branch
      %19 = sbr.rel (0) target = $region9
    $region8: #{tpu_custom_call.1} parent=1 // pred_region
      %s21 = ssub.s32 3072, 3072
      %22 = vsyncadd [#allocation3], %s21
      %s23 = sshll.u32 [#allocation2], 4
      %s24 = int_to_ptr.vmem [resolvable:$true] %s23
      %29 = dma.hbm_to_vmem [thread:$0]  %s1, 3072, %s24, [#allocation3], 1024, 1024, 64
    $region9: #{tpu_custom_call.1} parent=1 // pred_fallthru
      _
    // Predicated region
    $region10: #{tpu_custom_call.1} parent=1 // pred_check
      _
    $region11: #{tpu_custom_call.1} parent=1 // pred_check_branch
      %31 = sbr.rel (0) target = $region13
    $region12: #{tpu_custom_call.1} parent=1 // pred_region
      _
    $region13: #{tpu_custom_call.1} parent=1 // pred_fallthru
      _
    // Predicated region
    $region14: #{tpu_custom_call.1} parent=1 // pred_check
      _
    $region15: #{tpu_custom_call.1} parent=1 // pred_check_branch
      %33 = sbr.rel (0) target = $region17
    $region16: #{tpu_custom_call.1} parent=1 // pred_region
      _
    $region17: #{tpu_custom_call.1} parent=1 // pred_fallthru
      _
    // Predicated region
    $region18: #{tpu_custom_call.1} parent=1 // pred_check
      _
    $region19: #{tpu_custom_call.1} parent=1 // pred_check_branch
      %35 = sbr.rel (0) target = $region21
    $region20: #{tpu_custom_call.1} parent=1 // pred_region
      %s37 = ssub.s32 8192, 8192
      %38 = vsyncadd [#allocation6], %s37
      %s39 = sshll.u32 [#allocation5], 4
      %s40 = int_to_ptr.vmem [resolvable:$true] %s39
      %45 = dma.hbm_to_vmem [thread:$0]  %s4, 8192, %s40, [#allocation6], 512, 512, 32
    $region21: #{tpu_custom_call.1} parent=1 // pred_fallthru
      _
    // Predicated region
    $region22: #{tpu_custom_call.1} parent=1 // pred_check
      _
    $region23: #{tpu_custom_call.1} parent=1 // pred_check_branch
      %47 = sbr.rel (0) target = $region25
    $region24: #{tpu_custom_call.1} parent=1 // pred_region
      %s49 = ssub.s32 8192, 8192
      %50 = vsyncadd [#allocation6], %s49
      %s51 = sshll.u32 [#allocation7], 4
      %s52 = int_to_ptr.vmem [resolvable:$true] %s51
      %57 = dma.hbm_to_vmem [thread:$0]  %s5, 8192, %s52, [#allocation6], 64, 64, 4
    $region25: #{tpu_custom_call.1} parent=1 // pred_fallthru
      _
    // Predicated region
    $region26: #{tpu_custom_call.1} parent=1 // pred_check
      _
    $region27: #{tpu_custom_call.1} parent=1 // pred_check_branch
      %59 = sbr.rel (0) target = $region29
    $region28: #{tpu_custom_call.1} parent=1 // pred_region
      _
    $region29: #{tpu_custom_call.1} parent=1 // pred_fallthru
      _
    // Predicated region
    $region30: #{tpu_custom_call.1} parent=1 // pred_check
      _
    $region31: #{tpu_custom_call.1} parent=1 // pred_check_branch
      %61 = sbr.rel (0) target = $region33
    $region32: #{tpu_custom_call.1} parent=1 // pred_region
      _
    $region33: #{tpu_custom_call.1} parent=1 // pred_fallthru
      _
    // Predicated region
    $region34: #{tpu_custom_call.1} parent=1 // pred_check
      _
    $region35: #{tpu_custom_call.1} parent=1 // pred_check_branch
      %63 = sbr.rel (0) target = $region37
    $region36: #{tpu_custom_call.1} parent=1 // pred_region
      %64 = dma.done [#allocation3], 3072
    $region37: #{tpu_custom_call.1} parent=1 // pred_fallthru
      _
    // Predicated region
    $region38: #{tpu_custom_call.1} parent=1 // pred_check
      _
    $region39: #{tpu_custom_call.1} parent=1 // pred_check_branch
      %66 = sbr.rel (0) target = $region41
    $region40: #{tpu_custom_call.1} parent=1 // pred_region
      %67 = dma.done [#allocation6], 8192
    $region41: #{tpu_custom_call.1} parent=1 // pred_fallthru
      _
    // Predicated region
    $region42: #{tpu_custom_call.1} parent=1 // pred_check
      _
    $region43: #{tpu_custom_call.1} parent=1 // pred_check_branch
      %69 = sbr.rel (0) target = $region45
    $region44: #{tpu_custom_call.1} parent=1 // pred_region
      %70 = dma.done [#allocation6], 8192
    $region45: #{tpu_custom_call.1} parent=1 // pred_fallthru
      _
    %v72 = vld [vmem:[%s0] sm:$0xff]
    %v73 = vld [vmem:[%s0 + $0x8] sm:$0xff]
    %v74 = vld [vmem:[%s0 + $0x10] sm:$0xff]
    %v75 = vld [vmem:[%s0 + $0x18] sm:$0xff]
    %v76 = vld [vmem:[%s2] sm:$0x7]
    %v77 = vld [vmem:[#allocation2] ss:$0 sm:$0xff]
    %vm78 = vcmask 23552
    %v80 = vsel %vm78, %v72, 0
    %v83 = vsel %vm78, %v73, 0
    %v86 = vsel %vm78, %v74, 0
    %v89 = vsel %vm78, %v75, 0
    %vm91 = vcmask 1042432
    %v93 = vsel %vm91, %v76, 0
    %95 = vmatprep.subr.mxu0 0.0
    %96 = vmatpush1.msra.mxu0 %v93
    %97 = vmatprep.subr.mxu0 0.0
    %98 = vmatpush1.msra.mxu0 0.0
    %99 = vmatprep.subr.mxu0 0.0
    %100 = vmatpush1.msra.mxu0 0.0
    %101 = vmatprep.subr.mxu0 0.0
    %102 = vmatpush1.msra.mxu0 0.0
    %103 = vmatprep.subr.mxu0 0.0
    %104 = vmatpush1.msra.mxu0 0.0
    %105 = vmatprep.subr.mxu0 0.0
    %106 = vmatpush1.msra.mxu0 0.0
    %107 = vmatprep.subr.mxu0 0.0
    %108 = vmatpush1.msra.mxu0 0.0
    %109 = vmatprep.subr.mxu0 0.0
    %110 = vmatpush1.msra.mxu0 0.0
    %111 = vmatprep.subr.mxu0 0.0
    %112 = vmatpush1.msra.mxu0 0.0
    %113 = vmatprep.subr.mxu0 0.0
    %114 = vmatpush1.msra.mxu0 0.0
    %115 = vmatprep.subr.mxu0 0.0
    %116 = vmatpush1.msra.mxu0 0.0
    %117 = vmatprep.subr.mxu0 0.0
    %118 = vmatpush1.msra.mxu0 0.0
    %119 = vmatprep.subr.mxu0 0.0
    %120 = vmatpush1.msra.mxu0 0.0
    %121 = vmatprep.subr.mxu0 0.0
    %122 = vmatpush1.msra.mxu0 0.0
    %123 = vmatprep.subr.mxu0 0.0
    %124 = vmatpush1.msra.mxu0 0.0
    %125 = vmatprep.subr.mxu0 0.0
    %126 = vmatpush1.msra.mxu0 0.0
    %127 = vmatprep.subr.mxu0 0.0
    %128 = vmatpush1.msra.mxu0 0.0
    %129 = vmatprep.subr.mxu0 0.0
    %130 = vmatpush1.msra.mxu0 0.0
    %131 = vmatprep.subr.mxu0 0.0
    %132 = vmatpush1.msra.mxu0 0.0
    %133 = vmatprep.subr.mxu0 0.0
    %134 = vmatpush1.msra.mxu0 0.0
    %135 = vmatprep.subr.mxu0 0.0
    %136 = vmatpush1.msra.mxu0 0.0
    %137 = vmatprep.subr.mxu0 0.0
    %138 = vmatpush1.msra.mxu0 0.0
    %139 = vmatprep.subr.mxu0 0.0
    %140 = vmatpush1.msra.mxu0 0.0
    %141 = vmatprep.subr.mxu0 0.0
    %142 = vmatpush1.msra.mxu0 0.0
    %143 = vmatprep.subr.mxu0 0.0
    %144 = vmatpush1.msra.mxu0 0.0
    %145 = vmatprep.subr.mxu0 0.0
    %146 = vmatpush1.msra.mxu0 0.0
    %147 = vmatprep.subr.mxu0 0.0
    %148 = vmatpush1.msra.mxu0 0.0
    %149 = vmatprep.subr.mxu0 0.0
    %150 = vmatpush1.msra.mxu0 0.0
    %151 = vmatprep.subr.mxu0 0.0
    %152 = vmatpush1.msra.mxu0 0.0
    %153 = vmatprep.subr.mxu0 0.0
    %154 = vmatpush1.msra.mxu0 0.0
    %155 = vmatprep.subr.mxu0 0.0
    %156 = vmatpush1.msra.mxu0 0.0
    %157 = vmatprep.subr.mxu0 0.0
    %158 = vmatpush1.msra.mxu0 0.0
    %159 = vmatprep.mubr.f32.mxu0 0.0
    %160 = vmatmul.mubr.f32.gmra.mrb[0].mxu0 %v80
    %v161 = vpop.f32.mrb[0].mxu0
    %v162 = vadd.f32 %v77, %v161
    %v163 = vpop.f32.mrb[0].mxu0
    %164 = vmatprep.mubr.f32.mxu0 0.0
    %165 = vmatmul.mubr.f32.gmra.mrb[0].mxu0 %v83
    %v166 = vpop.f32.mrb[0].mxu0
    %v167 = vadd.f32 %v77, %v166
    %v168 = vpop.f32.mrb[0].mxu0
    %169 = vmatprep.mubr.f32.mxu0 0.0
    %170 = vmatmul.mubr.f32.gmra.mrb[0].mxu0 %v86
    %v171 = vpop.f32.mrb[0].mxu0
    %v172 = vadd.f32 %v77, %v171
    %v173 = vpop.f32.mrb[0].mxu0
    %174 = vmatprep.mubr.f32.mxu0 0.0
    %175 = vmatmul.mubr.f32.gmra.mrb[0].mxu0 %v89
    %v176 = vpop.f32.mrb[0].mxu0
    %v177 = vadd.f32 %v77, %v176
    %v178 = vpop.f32.mrb[0].mxu0
    %179 = vdwg.mxu0
    %v180 = vld [vmem:[#allocation2 + $0x1] ss:$0 sm:$0xff]
    %v181 = vld [vmem:[#allocation2 + $0x2] ss:$0 sm:$0xff]
    %vm182 = vcmask 523264
    %v183 = vsel %vm182, %v162, 0.0
    %v184 = vsel %vm182, %v167, 0.0
    %v185 = vadd.f32 %v183, %v184
    %v186 = vsel %vm182, %v172, 0.0
    %v187 = vadd.f32 %v185, %v186
    %v188 = vsel %vm182, %v177, 0.0
    %v189 = vadd.f32 %v187, %v188
    %v190 = vrot.slane %v189, 4
    %v191 = vadd.f32 %v189, %v190
    %v192 = vrot.slane %v191, 2
    %v193 = vadd.f32 %v191, %v192
    %v194 = vrot.slane %v193, 1
    %v195 = vadd.f32 %v193, %v194
    %v196 = vrcp.pop 32.0
    %v197 = vmul.f32 %v195, %v196
    %v198 = vsub.f32 %v162, %v197
    %v199 = vsub.f32 %v167, %v197
    %v200 = vsub.f32 %v172, %v197
    %v201 = vsub.f32 %v177, %v197
    %v202 = vmul.f32 %v198, %v198
    %v203 = vmul.f32 %v199, %v199
    %v204 = vmul.f32 %v200, %v200
    %v205 = vmul.f32 %v201, %v201
    %v206 = vsel %vm182, %v202, 0.0
    %v207 = vsel %vm182, %v203, 0.0
    %v208 = vadd.f32 %v206, %v207
    %v209 = vsel %vm182, %v204, 0.0
    %v210 = vadd.f32 %v208, %v209
    %v211 = vsel %vm182, %v205, 0.0
    %v212 = vadd.f32 %v210, %v211
    %v213 = vrot.slane %v212, 4
    %v214 = vadd.f32 %v212, %v213
    %v215 = vrot.slane %v214, 2
    %v216 = vadd.f32 %v214, %v215
    %v217 = vrot.slane %v216, 1
    %v218 = vadd.f32 %v216, %v217
    %v219 = vmul.f32 %v218, %v196
    %v220 = vadd.f32 %v219, 1e-05
    %v221 = vrsqrt.pop %v220
    %v222 = vmul.f32 %v180, %v221
    %v223 = vmul.f32 %v198, %v222
    %v224 = vmul.f32 %v199, %v222
    %v225 = vmul.f32 %v200, %v222
    %v226 = vmul.f32 %v201, %v222
    %v227 = vadd.f32 %v223, %v181
    %v228 = vadd.f32 %v224, %v181
    %v229 = vadd.f32 %v225, %v181
    %v230 = vadd.f32 %v226, %v181
    %v231 = vmax.f32 %v227, 0.0
    %v232 = vmax.f32 %v228, 0.0
    %v233 = vmax.f32 %v229, 0.0
    %v234 = vmax.f32 %v230, 0.0
    %v235 = vpack.c.bf16 %v232, %v231
    %v236 = vpack.c.bf16 %v234, %v233
    %v237 = vld [vmem:[%s3] sm:$0xf]
    %v238 = vld [vmem:[%s3 + $0x4] sm:$0xf]
    %v239 = vld [vmem:[%s3 + $0x8] sm:$0xf]
    %v240 = vld [vmem:[%s3 + $0xc] sm:$0xf]
    %v241 = vld [vmem:[%s3 + $0x10] sm:$0xf]
    %v242 = vld [vmem:[%s3 + $0x14] sm:$0xf]
    %v243 = vld [vmem:[%s3 + $0x18] sm:$0xf]
    %v244 = vld [vmem:[%s3 + $0x1c] sm:$0xf]
    %v245 = vld [vmem:[#allocation2 + $0x3] ss:$0 sm:$0xff]
    %v254 = vunpack.c.l.b16 %v237
    %v255 = vunpack.c.l.b16 %v238
    %v256 = vunpack.c.l.b16 %v239
    %v257 = vunpack.c.l.b16 %v240
    %v258 = vunpack.c.l.b16 %v241
    %v259 = vunpack.c.l.b16 %v242
    %v260 = vunpack.c.l.b16 %v243
    %v261 = vunpack.c.l.b16 %v244
    %v262 = vpack.c.b16 %v255, %v254
    %v263 = vpack.c.b16 %v257, %v256
    %v264 = vpack.c.b16 %v259, %v258
    %v265 = vpack.c.b16 %v261, %v260
    %v271 = vsel %vm182, %v235, 0
    %v274 = vsel %vm182, %v236, 0
    %276 = vmatprep.subr.bf16.mxu0 0
    %277 = vmatpush1.bf16.msra.mxu0 %v262
    %278 = vmatprep.subr.bf16.mxu0 0
    %279 = vmatpush1.bf16.msra.mxu0 %v263
    %280 = vmatprep.subr.bf16.mxu0 0
    %281 = vmatpush1.bf16.msra.mxu0 %v264
    %282 = vmatprep.subr.bf16.mxu0 0
    %283 = vmatpush1.bf16.msra.mxu0 %v265
    %284 = vmatprep.subr.bf16.mxu0 0
    %285 = vmatpush1.bf16.msra.mxu0 0
    %286 = vmatprep.subr.bf16.mxu0 0
    %287 = vmatpush1.bf16.msra.mxu0 0
    %288 = vmatprep.subr.bf16.mxu0 0
    %289 = vmatpush1.bf16.msra.mxu0 0
    %290 = vmatprep.subr.bf16.mxu0 0
    %291 = vmatpush1.bf16.msra.mxu0 0
    %292 = vmatprep.subr.bf16.mxu0 0
    %293 = vmatpush1.bf16.msra.mxu0 0
    %294 = vmatprep.subr.bf16.mxu0 0
    %295 = vmatpush1.bf16.msra.mxu0 0
    %296 = vmatprep.subr.bf16.mxu0 0
    %297 = vmatpush1.bf16.msra.mxu0 0
    %298 = vmatprep.subr.bf16.mxu0 0
    %299 = vmatpush1.bf16.msra.mxu0 0
    %300 = vmatprep.subr.bf16.mxu0 0
    %301 = vmatpush1.bf16.msra.mxu0 0
    %302 = vmatprep.subr.bf16.mxu0 0
    %303 = vmatpush1.bf16.msra.mxu0 0
    %304 = vmatprep.subr.bf16.mxu0 0
    %305 = vmatpush1.bf16.msra.mxu0 0
    %306 = vmatprep.subr.bf16.mxu0 0
    %307 = vmatpush1.bf16.msra.mxu0 0
    %308 = vmatprep.mubr.bf16.mxu0 0
    %309 = vmatmul.mubr.bf16.gmra.mrb[0].mxu0 %v271
    %v310 = vpop.f32.mrb[0].mxu0
    %v311 = vadd.f32 %v245, %v310
    %v312 = vpop.f32.mrb[0].mxu0
    %v313 = vpop.f32.mrb[0].mxu0
    %v314 = vadd.f32 %v245, %v313
    %v315 = vpop.f32.mrb[0].mxu0
    %316 = vmatprep.mubr.bf16.mxu0 0
    %317 = vmatmul.mubr.bf16.gmra.mrb[0].mxu0 %v274
    %v318 = vpop.f32.mrb[0].mxu0
    %v319 = vadd.f32 %v245, %v318
    %v320 = vpop.f32.mrb[0].mxu0
    %v321 = vpop.f32.mrb[0].mxu0
    %v322 = vadd.f32 %v245, %v321
    %v323 = vpop.f32.mrb[0].mxu0
    %324 = vdwg.mxu0
    %v325 = vld [vmem:[#allocation2 + $0x4] ss:$0 sm:$0xff]
    %v326 = vld [vmem:[#allocation2 + $0x5] ss:$0 sm:$0xff]
    %v327 = vadd.f32 %v311, %v314
    %v328 = vadd.f32 %v327, %v319
    %v329 = vadd.f32 %v328, %v322
    %v330 = vrot.slane %v329, 4
    %v331 = vadd.f32 %v329, %v330
    %v332 = vrot.slane %v331, 2
    %v333 = vadd.f32 %v331, %v332
    %v334 = vrot.slane %v333, 1
    %v335 = vadd.f32 %v333, %v334
    %v336 = vmul.f32 %v335, %v196
    %v337 = vsub.f32 %v311, %v336
    %v338 = vsub.f32 %v314, %v336
    %v339 = vsub.f32 %v319, %v336
    %v340 = vsub.f32 %v322, %v336
    %v341 = vmul.f32 %v337, %v337
    %v342 = vmul.f32 %v338, %v338
    %v343 = vmul.f32 %v339, %v339
    %v344 = vmul.f32 %v340, %v340
    %v345 = vadd.f32 %v341, %v342
    %v346 = vadd.f32 %v345, %v343
    %v347 = vadd.f32 %v346, %v344
    %v348 = vrot.slane %v347, 4
    %v349 = vadd.f32 %v347, %v348
    %v350 = vrot.slane %v349, 2
    %v351 = vadd.f32 %v349, %v350
    %v352 = vrot.slane %v351, 1
    %v353 = vadd.f32 %v351, %v352
    %v354 = vmul.f32 %v353, %v196
    %v355 = vadd.f32 %v354, 1e-05
    %v356 = vrsqrt.pop %v355
    %v357 = vmul.f32 %v325, %v356
    %v358 = vmul.f32 %v337, %v357
    %v359 = vmul.f32 %v338, %v357
    %v360 = vmul.f32 %v339, %v357
    %v361 = vmul.f32 %v340, %v357
    %v362 = vadd.f32 %v358, %v326
    %v363 = vadd.f32 %v359, %v326
    %v364 = vadd.f32 %v360, %v326
    %v365 = vadd.f32 %v361, %v326
    %v366 = vmax.f32 %v362, 0.0
    %v367 = vmax.f32 %v363, 0.0
    %v368 = vmax.f32 %v364, 0.0
    %v369 = vmax.f32 %v365, 0.0
    %v370 = vpack.c.bf16 %v367, %v366
    %v371 = vpack.c.bf16 %v369, %v368
    %v372 = vld [vmem:[#allocation5] sm:$0xff]
    %v373 = vld [vmem:[#allocation5 + $0x8] sm:$0xff]
    %v374 = vld [vmem:[#allocation5 + $0x10] sm:$0xff]
    %v375 = vld [vmem:[#allocation5 + $0x18] sm:$0xff]
    %v376 = vld [vmem:[#allocation5 + $0x20] sm:$0xff]
    %v377 = vld [vmem:[#allocation5 + $0x28] sm:$0xff]
    %v378 = vld [vmem:[#allocation5 + $0x30] sm:$0xff]
    %v379 = vld [vmem:[#allocation5 + $0x38] sm:$0xff]
    %v380 = vld [vmem:[#allocation5 + $0x40] sm:$0xff]
    %v381 = vld [vmem:[#allocation5 + $0x48] sm:$0xff]
    %v382 = vld [vmem:[#allocation5 + $0x50] sm:$0xff]
    %v383 = vld [vmem:[#allocation5 + $0x58] sm:$0xff]
    %v384 = vld [vmem:[#allocation5 + $0x60] sm:$0xff]
    %v385 = vld [vmem:[#allocation5 + $0x68] sm:$0xff]
    %v386 = vld [vmem:[#allocation5 + $0x70] sm:$0xff]
    %v387 = vld [vmem:[#allocation5 + $0x78] sm:$0xff]
    %v388 = vld [vmem:[#allocation5 + $0x80] sm:$0xff]
    %v389 = vld [vmem:[#allocation5 + $0x88] sm:$0xff]
    %v390 = vld [vmem:[#allocation5 + $0x90] sm:$0xff]
    %v391 = vld [vmem:[#allocation5 + $0x98] sm:$0xff]
    %v392 = vld [vmem:[#allocation5 + $0xa0] sm:$0xff]
    %v393 = vld [vmem:[#allocation5 + $0xa8] sm:$0xff]
    %v394 = vld [vmem:[#allocation5 + $0xb0] sm:$0xff]
    %v395 = vld [vmem:[#allocation5 + $0xb8] sm:$0xff]
    %v396 = vld [vmem:[#allocation5 + $0xc0] sm:$0xff]
    %v397 = vld [vmem:[#allocation5 + $0xc8] sm:$0xff]
    %v398 = vld [vmem:[#allocation5 + $0xd0] sm:$0xff]
    %v399 = vld [vmem:[#allocation5 + $0xd8] sm:$0xff]
    %v400 = vld [vmem:[#allocation5 + $0xe0] sm:$0xff]
    %v401 = vld [vmem:[#allocation5 + $0xe8] sm:$0xff]
    %v402 = vld [vmem:[#allocation5 + $0xf0] sm:$0xff]
    %v403 = vld [vmem:[#allocation5 + $0xf8] sm:$0xff]
    %v404 = vld [vmem:[#allocation5 + $0x100] sm:$0xff]
    %v405 = vld [vmem:[#allocation5 + $0x108] sm:$0xff]
    %v406 = vld [vmem:[#allocation5 + $0x110] sm:$0xff]
    %v407 = vld [vmem:[#allocation5 + $0x118] sm:$0xff]
    %v408 = vld [vmem:[#allocation5 + $0x120] sm:$0xff]
    %v409 = vld [vmem:[#allocation5 + $0x128] sm:$0xff]
    %v410 = vld [vmem:[#allocation5 + $0x130] sm:$0xff]
    %v411 = vld [vmem:[#allocation5 + $0x138] sm:$0xff]
    %v412 = vld [vmem:[#allocation5 + $0x140] sm:$0xff]
    %v413 = vld [vmem:[#allocation5 + $0x148] sm:$0xff]
    %v414 = vld [vmem:[#allocation5 + $0x150] sm:$0xff]
    %v415 = vld [vmem:[#allocation5 + $0x158] sm:$0xff]
    %v416 = vld [vmem:[#allocation5 + $0x160] sm:$0xff]
    %v417 = vld [vmem:[#allocation5 + $0x168] sm:$0xff]
    %v418 = vld [vmem:[#allocation5 + $0x170] sm:$0xff]
    %v419 = vld [vmem:[#allocation5 + $0x178] sm:$0xff]
    %v420 = vld [vmem:[#allocation5 + $0x180] sm:$0xff]
    %v421 = vld [vmem:[#allocation5 + $0x188] sm:$0xff]
    %v422 = vld [vmem:[#allocation5 + $0x190] sm:$0xff]
    %v423 = vld [vmem:[#allocation5 + $0x198] sm:$0xff]
    %v424 = vld [vmem:[#allocation5 + $0x1a0] sm:$0xff]
    %v425 = vld [vmem:[#allocation5 + $0x1a8] sm:$0xff]
    %v426 = vld [vmem:[#allocation5 + $0x1b0] sm:$0xff]
    %v427 = vld [vmem:[#allocation5 + $0x1b8] sm:$0xff]
    %v428 = vld [vmem:[#allocation5 + $0x1c0] sm:$0xff]
    %v429 = vld [vmem:[#allocation5 + $0x1c8] sm:$0xff]
    %v430 = vld [vmem:[#allocation5 + $0x1d0] sm:$0xff]
    %v431 = vld [vmem:[#allocation5 + $0x1d8] sm:$0xff]
    %v432 = vld [vmem:[#allocation5 + $0x1e0] sm:$0xff]
    %v433 = vld [vmem:[#allocation5 + $0x1e8] sm:$0xff]
    %v434 = vld [vmem:[#allocation5 + $0x1f0] sm:$0xff]
    %v435 = vld [vmem:[#allocation5 + $0x1f8] sm:$0xff]
    %s436 = scalar_lea.vmem [#allocation2], 6
    %v437 = vld [vmem:[%s436] ss:$8 sm:$0xf]
    %v438 = vld [vmem:[%s436] ss:$8 sm:$0xf0]
    %v439 = vor.u32 %v437, %v438
    %v441 = vlaneseq
    %v442 = vshrl.u32 %v441, 7
    %v443 = vsub.s32 0, %v442
    %v444 = vrot.slane %v439, %v443
    %v445 = vlaneseq
    %v446 = vshrl.u32 %v445, 7
    %v447 = vsub.s32 1, %v446
    %v448 = vrot.slane %v439, %v447
    %v449 = vlaneseq
    %v450 = vshrl.u32 %v449, 7
    %v451 = vsub.s32 2, %v450
    %v452 = vrot.slane %v439, %v451
    %v453 = vlaneseq
    %v454 = vshrl.u32 %v453, 7
    %v455 = vsub.s32 3, %v454
    %v456 = vrot.slane %v439, %v455
    %v457 = vlaneseq
    %v458 = vshrl.u32 %v457, 7
    %v459 = vsub.s32 4, %v458
    %v460 = vrot.slane %v439, %v459
    %v461 = vlaneseq
    %v462 = vshrl.u32 %v461, 7
    %v463 = vsub.s32 5, %v462
    %v464 = vrot.slane %v439, %v463
    %v465 = vlaneseq
    %v466 = vshrl.u32 %v465, 7
    %v467 = vsub.s32 6, %v466
    %v468 = vrot.slane %v439, %v467
    %v469 = vlaneseq
    %v470 = vshrl.u32 %v469, 7
    %v471 = vsub.s32 7, %v470
    %v472 = vrot.slane %v439, %v471
    %v545 = vunpack.c.l.b16 %v372
    %v546 = vunpack.c.h.b16 %v372
    %v547 = vunpack.c.l.b16 %v373
    %v548 = vunpack.c.h.b16 %v373
    %v549 = vunpack.c.l.b16 %v374
    %v550 = vunpack.c.h.b16 %v374
    %v551 = vunpack.c.l.b16 %v375
    %v552 = vunpack.c.h.b16 %v375
    %v553 = vunpack.c.l.b16 %v376
    %v554 = vunpack.c.h.b16 %v376
    %v555 = vunpack.c.l.b16 %v377
    %v556 = vunpack.c.h.b16 %v377
    %v557 = vunpack.c.l.b16 %v378
    %v558 = vunpack.c.h.b16 %v378
    %v559 = vunpack.c.l.b16 %v379
    %v560 = vunpack.c.h.b16 %v379
    %v561 = vunpack.c.l.b16 %v380
    %v562 = vunpack.c.h.b16 %v380
    %v563 = vunpack.c.l.b16 %v381
    %v564 = vunpack.c.h.b16 %v381
    %v565 = vunpack.c.l.b16 %v382
    %v566 = vunpack.c.h.b16 %v382
    %v567 = vunpack.c.l.b16 %v383
    %v568 = vunpack.c.h.b16 %v383
    %v569 = vunpack.c.l.b16 %v384
    %v570 = vunpack.c.h.b16 %v384
    %v571 = vunpack.c.l.b16 %v385
    %v572 = vunpack.c.h.b16 %v385
    %v573 = vunpack.c.l.b16 %v386
    %v574 = vunpack.c.h.b16 %v386
    %v575 = vunpack.c.l.b16 %v387
    %v576 = vunpack.c.h.b16 %v387
    %v577 = vunpack.c.l.b16 %v388
    %v578 = vunpack.c.h.b16 %v388
    %v579 = vunpack.c.l.b16 %v389
    %v580 = vunpack.c.h.b16 %v389
    %v581 = vunpack.c.l.b16 %v390
    %v582 = vunpack.c.h.b16 %v390
    %v583 = vunpack.c.l.b16 %v391
    %v584 = vunpack.c.h.b16 %v391
    %v585 = vunpack.c.l.b16 %v392
    %v586 = vunpack.c.h.b16 %v392
    %v587 = vunpack.c.l.b16 %v393
    %v588 = vunpack.c.h.b16 %v393
    %v589 = vunpack.c.l.b16 %v394
    %v590 = vunpack.c.h.b16 %v394
    %v591 = vunpack.c.l.b16 %v395
    %v592 = vunpack.c.h.b16 %v395
    %v593 = vunpack.c.l.b16 %v396
    %v594 = vunpack.c.h.b16 %v396
    %v595 = vunpack.c.l.b16 %v397
    %v596 = vunpack.c.h.b16 %v397
    %v597 = vunpack.c.l.b16 %v398
    %v598 = vunpack.c.h.b16 %v398
    %v599 = vunpack.c.l.b16 %v399
    %v600 = vunpack.c.h.b16 %v399
    %v601 = vunpack.c.l.b16 %v400
    %v602 = vunpack.c.h.b16 %v400
    %v603 = vunpack.c.l.b16 %v401
    %v604 = vunpack.c.h.b16 %v401
    %v605 = vunpack.c.l.b16 %v402
    %v606 = vunpack.c.h.b16 %v402
    %v607 = vunpack.c.l.b16 %v403
    %v608 = vunpack.c.h.b16 %v403
    %v609 = vunpack.c.l.b16 %v404
    %v610 = vunpack.c.h.b16 %v404
    %v611 = vunpack.c.l.b16 %v405
    %v612 = vunpack.c.h.b16 %v405
    %v613 = vunpack.c.l.b16 %v406
    %v614 = vunpack.c.h.b16 %v406
    %v615 = vunpack.c.l.b16 %v407
    %v616 = vunpack.c.h.b16 %v407
    %v617 = vunpack.c.l.b16 %v408
    %v618 = vunpack.c.h.b16 %v408
    %v619 = vunpack.c.l.b16 %v409
    %v620 = vunpack.c.h.b16 %v409
    %v621 = vunpack.c.l.b16 %v410
    %v622 = vunpack.c.h.b16 %v410
    %v623 = vunpack.c.l.b16 %v411
    %v624 = vunpack.c.h.b16 %v411
    %v625 = vunpack.c.l.b16 %v412
    %v626 = vunpack.c.h.b16 %v412
    %v627 = vunpack.c.l.b16 %v413
    %v628 = vunpack.c.h.b16 %v413
    %v629 = vunpack.c.l.b16 %v414
    %v630 = vunpack.c.h.b16 %v414
    %v631 = vunpack.c.l.b16 %v415
    %v632 = vunpack.c.h.b16 %v415
    %v633 = vunpack.c.l.b16 %v416
    %v634 = vunpack.c.h.b16 %v416
    %v635 = vunpack.c.l.b16 %v417
    %v636 = vunpack.c.h.b16 %v417
    %v637 = vunpack.c.l.b16 %v418
    %v638 = vunpack.c.h.b16 %v418
    %v639 = vunpack.c.l.b16 %v419
    %v640 = vunpack.c.h.b16 %v419
    %v641 = vunpack.c.l.b16 %v420
    %v642 = vunpack.c.h.b16 %v420
    %v643 = vunpack.c.l.b16 %v421
    %v644 = vunpack.c.h.b16 %v421
    %v645 = vunpack.c.l.b16 %v422
    %v646 = vunpack.c.h.b16 %v422
    %v647 = vunpack.c.l.b16 %v423
    %v648 = vunpack.c.h.b16 %v423
    %v649 = vunpack.c.l.b16 %v424
    %v650 = vunpack.c.h.b16 %v424
    %v651 = vunpack.c.l.b16 %v425
    %v652 = vunpack.c.h.b16 %v425
    %v653 = vunpack.c.l.b16 %v426
    %v654 = vunpack.c.h.b16 %v426
    %v655 = vunpack.c.l.b16 %v427
    %v656 = vunpack.c.h.b16 %v427
    %v657 = vunpack.c.l.b16 %v428
    %v658 = vunpack.c.h.b16 %v428
    %v659 = vunpack.c.l.b16 %v429
    %v660 = vunpack.c.h.b16 %v429
    %v661 = vunpack.c.l.b16 %v430
    %v662 = vunpack.c.h.b16 %v430
    %v663 = vunpack.c.l.b16 %v431
    %v664 = vunpack.c.h.b16 %v431
    %v665 = vunpack.c.l.b16 %v432
    %v666 = vunpack.c.h.b16 %v432
    %v667 = vunpack.c.l.b16 %v433
    %v668 = vunpack.c.h.b16 %v433
    %v669 = vunpack.c.l.b16 %v434
    %v670 = vunpack.c.h.b16 %v434
    %v671 = vunpack.c.l.b16 %v435
    %v672 = vunpack.c.h.b16 %v435
    %v673 = vpack.c.b16 %v553, %v545
    %v674 = vpack.c.b16 %v554, %v546
    %v675 = vpack.c.b16 %v555, %v547
    %v676 = vpack.c.b16 %v556, %v548
    %v677 = vpack.c.b16 %v557, %v549
    %v678 = vpack.c.b16 %v558, %v550
    %v679 = vpack.c.b16 %v559, %v551
    %v680 = vpack.c.b16 %v560, %v552
    %v681 = vpack.c.b16 %v569, %v561
    %v682 = vpack.c.b16 %v570, %v562
    %v683 = vpack.c.b16 %v571, %v563
    %v684 = vpack.c.b16 %v572, %v564
    %v685 = vpack.c.b16 %v573, %v565
    %v686 = vpack.c.b16 %v574, %v566
    %v687 = vpack.c.b16 %v575, %v567
    %v688 = vpack.c.b16 %v576, %v568
    %v689 = vpack.c.b16 %v585, %v577
    %v690 = vpack.c.b16 %v586, %v578
    %v691 = vpack.c.b16 %v587, %v579
    %v692 = vpack.c.b16 %v588, %v580
    %v693 = vpack.c.b16 %v589, %v581
    %v694 = vpack.c.b16 %v590, %v582
    %v695 = vpack.c.b16 %v591, %v583
    %v696 = vpack.c.b16 %v592, %v584
    %v697 = vpack.c.b16 %v601, %v593
    %v698 = vpack.c.b16 %v602, %v594
    %v699 = vpack.c.b16 %v603, %v595
    %v700 = vpack.c.b16 %v604, %v596
    %v701 = vpack.c.b16 %v605, %v597
    %v702 = vpack.c.b16 %v606, %v598
    %v703 = vpack.c.b16 %v607, %v599
    %v704 = vpack.c.b16 %v608, %v600
    %v705 = vpack.c.b16 %v617, %v609
    %v706 = vpack.c.b16 %v618, %v610
    %v707 = vpack.c.b16 %v619, %v611
    %v708 = vpack.c.b16 %v620, %v612
    %v709 = vpack.c.b16 %v621, %v613
    %v710 = vpack.c.b16 %v622, %v614
    %v711 = vpack.c.b16 %v623, %v615
    %v712 = vpack.c.b16 %v624, %v616
    %v713 = vpack.c.b16 %v633, %v625
    %v714 = vpack.c.b16 %v634, %v626
    %v715 = vpack.c.b16 %v635, %v627
    %v716 = vpack.c.b16 %v636, %v628
    %v717 = vpack.c.b16 %v637, %v629
    %v718 = vpack.c.b16 %v638, %v630
    %v719 = vpack.c.b16 %v639, %v631
    %v720 = vpack.c.b16 %v640, %v632
    %v721 = vpack.c.b16 %v649, %v641
    %v722 = vpack.c.b16 %v650, %v642
    %v723 = vpack.c.b16 %v651, %v643
    %v724 = vpack.c.b16 %v652, %v644
    %v725 = vpack.c.b16 %v653, %v645
    %v726 = vpack.c.b16 %v654, %v646
    %v727 = vpack.c.b16 %v655, %v647
    %v728 = vpack.c.b16 %v656, %v648
    %v729 = vpack.c.b16 %v665, %v657
    %v730 = vpack.c.b16 %v666, %v658
    %v731 = vpack.c.b16 %v667, %v659
    %v732 = vpack.c.b16 %v668, %v660
    %v733 = vpack.c.b16 %v669, %v661
    %v734 = vpack.c.b16 %v670, %v662
    %v735 = vpack.c.b16 %v671, %v663
    %v736 = vpack.c.b16 %v672, %v664
    %801 = vmatprep.subr.bf16.mxu0 %v674
    %802 = vmatpush1.bf16.msra.mxu0 %v673
    %803 = vmatprep.subr.bf16.mxu0 %v682
    %804 = vmatpush1.bf16.msra.mxu0 %v681
    %805 = vmatprep.subr.bf16.mxu0 %v690
    %806 = vmatpush1.bf16.msra.mxu0 %v689
    %807 = vmatprep.subr.bf16.mxu0 %v698
    %808 = vmatpush1.bf16.msra.mxu0 %v697
    %809 = vmatprep.subr.bf16.mxu0 %v706
    %810 = vmatpush1.bf16.msra.mxu0 %v705
    %811 = vmatprep.subr.bf16.mxu0 %v714
    %812 = vmatpush1.bf16.msra.mxu0 %v713
    %813 = vmatprep.subr.bf16.mxu0 %v722
    %814 = vmatpush1.bf16.msra.mxu0 %v721
    %815 = vmatprep.subr.bf16.mxu0 %v730
    %816 = vmatpush1.bf16.msra.mxu0 %v729
    %817 = vmatprep.subr.bf16.mxu0 0
    %818 = vmatpush1.bf16.msra.mxu0 0
    %819 = vmatprep.subr.bf16.mxu0 0
    %820 = vmatpush1.bf16.msra.mxu0 0
    %821 = vmatprep.subr.bf16.mxu0 0
    %822 = vmatpush1.bf16.msra.mxu0 0
    %823 = vmatprep.subr.bf16.mxu0 0
    %824 = vmatpush1.bf16.msra.mxu0 0
    %825 = vmatprep.subr.bf16.mxu0 0
    %826 = vmatpush1.bf16.msra.mxu0 0
    %827 = vmatprep.subr.bf16.mxu0 0
    %828 = vmatpush1.bf16.msra.mxu0 0
    %829 = vmatprep.subr.bf16.mxu0 0
    %830 = vmatpush1.bf16.msra.mxu0 0
    %831 = vmatprep.subr.bf16.mxu0 0
    %832 = vmatpush1.bf16.msra.mxu0 0
    %833 = vmatprep.mubr.bf16.mxu0 0
    %834 = vmatmul.mubr.bf16.gmra.mrb[0].mxu0 %v370
    %v835 = vpop.f32.mrb[0].mxu0
    %v836 = vadd.f32 %v444, %v835
    %v837 = vpop.f32.mrb[0].mxu0
    %v838 = vadd.f32 %v448, %v837
    %v839 = vpop.f32.mrb[0].mxu0
    %v840 = vadd.f32 %v444, %v839
    %v841 = vpop.f32.mrb[0].mxu0
    %v842 = vadd.f32 %v448, %v841
    %843 = vmatprep.mubr.bf16.mxu0 0
    %844 = vmatmul.mubr.bf16.gmra.mrb[0].mxu0 %v371
    %v845 = vpop.f32.mrb[0].mxu0
    %v846 = vadd.f32 %v444, %v845
    %v847 = vpop.f32.mrb[0].mxu0
    %v848 = vadd.f32 %v448, %v847
    %v849 = vpop.f32.mrb[0].mxu0
    %v850 = vadd.f32 %v444, %v849
    %v851 = vpop.f32.mrb[0].mxu0
    %v852 = vadd.f32 %v448, %v851
    %853 = vdwg.mxu0
    %854 = vmatprep.subr.bf16.mxu0 %v676
    %855 = vmatpush1.bf16.msra.mxu0 %v675
    %856 = vmatprep.subr.bf16.mxu0 %v684
    %857 = vmatpush1.bf16.msra.mxu0 %v683
    %858 = vmatprep.subr.bf16.mxu0 %v692
    %859 = vmatpush1.bf16.msra.mxu0 %v691
    %860 = vmatprep.subr.bf16.mxu0 %v700
    %861 = vmatpush1.bf16.msra.mxu0 %v699
    %862 = vmatprep.subr.bf16.mxu0 %v708
    %863 = vmatpush1.bf16.msra.mxu0 %v707
    %864 = vmatprep.subr.bf16.mxu0 %v716
    %865 = vmatpush1.bf16.msra.mxu0 %v715
    %866 = vmatprep.subr.bf16.mxu0 %v724
    %867 = vmatpush1.bf16.msra.mxu0 %v723
    %868 = vmatprep.subr.bf16.mxu0 %v732
    %869 = vmatpush1.bf16.msra.mxu0 %v731
    %870 = vmatprep.subr.bf16.mxu0 0
    %871 = vmatpush1.bf16.msra.mxu0 0
    %872 = vmatprep.subr.bf16.mxu0 0
    %873 = vmatpush1.bf16.msra.mxu0 0
    %874 = vmatprep.subr.bf16.mxu0 0
    %875 = vmatpush1.bf16.msra.mxu0 0
    %876 = vmatprep.subr.bf16.mxu0 0
    %877 = vmatpush1.bf16.msra.mxu0 0
    %878 = vmatprep.subr.bf16.mxu0 0
    %879 = vmatpush1.bf16.msra.mxu0 0
    %880 = vmatprep.subr.bf16.mxu0 0
    %881 = vmatpush1.bf16.msra.mxu0 0
    %882 = vmatprep.subr.bf16.mxu0 0
    %883 = vmatpush1.bf16.msra.mxu0 0
    %884 = vmatprep.subr.bf16.mxu0 0
    %885 = vmatpush1.bf16.msra.mxu0 0
    %886 = vmatprep.mubr.bf16.mxu0 0
    %887 = vmatmul.mubr.bf16.gmra.mrb[0].mxu0 %v370
    %v888 = vpop.f32.mrb[0].mxu0
    %v889 = vadd.f32 %v452, %v888
    %v890 = vpop.f32.mrb[0].mxu0
    %v891 = vadd.f32 %v456, %v890
    %v892 = vpop.f32.mrb[0].mxu0
    %v893 = vadd.f32 %v452, %v892
    %v894 = vpop.f32.mrb[0].mxu0
    %v895 = vadd.f32 %v456, %v894
    %896 = vmatprep.mubr.bf16.mxu0 0
    %897 = vmatmul.mubr.bf16.gmra.mrb[0].mxu0 %v371
    %v898 = vpop.f32.mrb[0].mxu0
    %v899 = vadd.f32 %v452, %v898
    %v900 = vpop.f32.mrb[0].mxu0
    %v901 = vadd.f32 %v456, %v900
    %v902 = vpop.f32.mrb[0].mxu0
    %v903 = vadd.f32 %v452, %v902
    %v904 = vpop.f32.mrb[0].mxu0
    %v905 = vadd.f32 %v456, %v904
    %906 = vdwg.mxu0
    %907 = vmatprep.subr.bf16.mxu0 %v678
    %908 = vmatpush1.bf16.msra.mxu0 %v677
    %909 = vmatprep.subr.bf16.mxu0 %v686
    %910 = vmatpush1.bf16.msra.mxu0 %v685
    %911 = vmatprep.subr.bf16.mxu0 %v694
    %912 = vmatpush1.bf16.msra.mxu0 %v693
    %913 = vmatprep.subr.bf16.mxu0 %v702
    %914 = vmatpush1.bf16.msra.mxu0 %v701
    %915 = vmatprep.subr.bf16.mxu0 %v710
    %916 = vmatpush1.bf16.msra.mxu0 %v709
    %917 = vmatprep.subr.bf16.mxu0 %v718
    %918 = vmatpush1.bf16.msra.mxu0 %v717
    %919 = vmatprep.subr.bf16.mxu0 %v726
    %920 = vmatpush1.bf16.msra.mxu0 %v725
    %921 = vmatprep.subr.bf16.mxu0 %v734
    %922 = vmatpush1.bf16.msra.mxu0 %v733
    %923 = vmatprep.subr.bf16.mxu0 0
    %924 = vmatpush1.bf16.msra.mxu0 0
    %925 = vmatprep.subr.bf16.mxu0 0
    %926 = vmatpush1.bf16.msra.mxu0 0
    %927 = vmatprep.subr.bf16.mxu0 0
    %928 = vmatpush1.bf16.msra.mxu0 0
    %929 = vmatprep.subr.bf16.mxu0 0
    %930 = vmatpush1.bf16.msra.mxu0 0
    %931 = vmatprep.subr.bf16.mxu0 0
    %932 = vmatpush1.bf16.msra.mxu0 0
    %933 = vmatprep.subr.bf16.mxu0 0
    %934 = vmatpush1.bf16.msra.mxu0 0
    %935 = vmatprep.subr.bf16.mxu0 0
    %936 = vmatpush1.bf16.msra.mxu0 0
    %937 = vmatprep.subr.bf16.mxu0 0
    %938 = vmatpush1.bf16.msra.mxu0 0
    %939 = vmatprep.mubr.bf16.mxu0 0
    %940 = vmatmul.mubr.bf16.gmra.mrb[0].mxu0 %v370
    %v941 = vpop.f32.mrb[0].mxu0
    %v942 = vadd.f32 %v460, %v941
    %v943 = vpop.f32.mrb[0].mxu0
    %v944 = vadd.f32 %v464, %v943
    %v945 = vpop.f32.mrb[0].mxu0
    %v946 = vadd.f32 %v460, %v945
    %v947 = vpop.f32.mrb[0].mxu0
    %v948 = vadd.f32 %v464, %v947
    %949 = vmatprep.mubr.bf16.mxu0 0
    %950 = vmatmul.mubr.bf16.gmra.mrb[0].mxu0 %v371
    %v951 = vpop.f32.mrb[0].mxu0
    %v952 = vadd.f32 %v460, %v951
    %v953 = vpop.f32.mrb[0].mxu0
    %v954 = vadd.f32 %v464, %v953
    %v955 = vpop.f32.mrb[0].mxu0
    %v956 = vadd.f32 %v460, %v955
    %v957 = vpop.f32.mrb[0].mxu0
    %v958 = vadd.f32 %v464, %v957
    %959 = vdwg.mxu0
    %960 = vmatprep.subr.bf16.mxu0 %v680
    %961 = vmatpush1.bf16.msra.mxu0 %v679
    %962 = vmatprep.subr.bf16.mxu0 %v688
    %963 = vmatpush1.bf16.msra.mxu0 %v687
    %964 = vmatprep.subr.bf16.mxu0 %v696
    %965 = vmatpush1.bf16.msra.mxu0 %v695
    %966 = vmatprep.subr.bf16.mxu0 %v704
    %967 = vmatpush1.bf16.msra.mxu0 %v703
    %968 = vmatprep.subr.bf16.mxu0 %v712
    %969 = vmatpush1.bf16.msra.mxu0 %v711
    %970 = vmatprep.subr.bf16.mxu0 %v720
    %971 = vmatpush1.bf16.msra.mxu0 %v719
    %972 = vmatprep.subr.bf16.mxu0 %v728
    %973 = vmatpush1.bf16.msra.mxu0 %v727
    %974 = vmatprep.subr.bf16.mxu0 %v736
    %975 = vmatpush1.bf16.msra.mxu0 %v735
    %976 = vmatprep.subr.bf16.mxu0 0
    %977 = vmatpush1.bf16.msra.mxu0 0
    %978 = vmatprep.subr.bf16.mxu0 0
    %979 = vmatpush1.bf16.msra.mxu0 0
    %980 = vmatprep.subr.bf16.mxu0 0
    %981 = vmatpush1.bf16.msra.mxu0 0
    %982 = vmatprep.subr.bf16.mxu0 0
    %983 = vmatpush1.bf16.msra.mxu0 0
    %984 = vmatprep.subr.bf16.mxu0 0
    %985 = vmatpush1.bf16.msra.mxu0 0
    %986 = vmatprep.subr.bf16.mxu0 0
    %987 = vmatpush1.bf16.msra.mxu0 0
    %988 = vmatprep.subr.bf16.mxu0 0
    %989 = vmatpush1.bf16.msra.mxu0 0
    %990 = vmatprep.subr.bf16.mxu0 0
    %991 = vmatpush1.bf16.msra.mxu0 0
    %992 = vmatprep.mubr.bf16.mxu0 0
    %993 = vmatmul.mubr.bf16.gmra.mrb[0].mxu0 %v370
    %v994 = vpop.f32.mrb[0].mxu0
    %v995 = vadd.f32 %v468, %v994
    %v996 = vpop.f32.mrb[0].mxu0
    %v997 = vadd.f32 %v472, %v996
    %v998 = vpop.f32.mrb[0].mxu0
    %v999 = vadd.f32 %v468, %v998
    %v1000 = vpop.f32.mrb[0].mxu0
    %v1001 = vadd.f32 %v472, %v1000
    %1002 = vmatprep.mubr.bf16.mxu0 0
    %1003 = vmatmul.mubr.bf16.gmra.mrb[0].mxu0 %v371
    %v1004 = vpop.f32.mrb[0].mxu0
    %v1005 = vadd.f32 %v468, %v1004
    %v1006 = vpop.f32.mrb[0].mxu0
    %v1007 = vadd.f32 %v472, %v1006
    %v1008 = vpop.f32.mrb[0].mxu0
    %v1009 = vadd.f32 %v468, %v1008
    %v1010 = vpop.f32.mrb[0].mxu0
    %v1011 = vadd.f32 %v472, %v1010
    %1012 = vdwg.mxu0
    %s1013 = scalar_lea.vmem [#allocation2], 7
    %v1014 = vld [vmem:[%s1013] ss:$8 sm:$0xf]
    %v1015 = vld [vmem:[%s1013] ss:$8 sm:$0xf0]
    %v1016 = vor.u32 %v1014, %v1015
    %s1017 = scalar_lea.vmem [#allocation2], 64
    %v1018 = vld [vmem:[%s1017] ss:$8 sm:$0xf]
    %v1019 = vld [vmem:[%s1017] ss:$8 sm:$0xf0]
    %v1020 = vor.u32 %v1018, %v1019
    %v1021 = vadd.f32 %v836, %v840
    %v1022 = vadd.f32 %v1021, %v846
    %v1023 = vadd.f32 %v1022, %v850
    %v1024 = vrot.slane %v1023, 4
    %v1025 = vadd.f32 %v1023, %v1024
    %v1026 = vrot.slane %v1025, 2
    %v1027 = vadd.f32 %v1025, %v1026
    %v1028 = vrot.slane %v1027, 1
    %v1029 = vadd.f32 %v1027, %v1028
    %v1030 = vadd.f32 %v838, %v842
    %v1031 = vadd.f32 %v1030, %v848
    %v1032 = vadd.f32 %v1031, %v852
    %v1033 = vrot.slane %v1032, 4
    %v1034 = vadd.f32 %v1032, %v1033
    %v1035 = vrot.slane %v1034, 2
    %v1036 = vadd.f32 %v1034, %v1035
    %v1037 = vrot.slane %v1036, 1
    %v1038 = vadd.f32 %v1036, %v1037
    %v1039 = vadd.f32 %v889, %v893
    %v1040 = vadd.f32 %v1039, %v899
    %v1041 = vadd.f32 %v1040, %v903
    %v1042 = vrot.slane %v1041, 4
    %v1043 = vadd.f32 %v1041, %v1042
    %v1044 = vrot.slane %v1043, 2
    %v1045 = vadd.f32 %v1043, %v1044
    %v1046 = vrot.slane %v1045, 1
    %v1047 = vadd.f32 %v1045, %v1046
    %v1048 = vadd.f32 %v891, %v895
    %v1049 = vadd.f32 %v1048, %v901
    %v1050 = vadd.f32 %v1049, %v905
    %v1051 = vrot.slane %v1050, 4
    %v1052 = vadd.f32 %v1050, %v1051
    %v1053 = vrot.slane %v1052, 2
    %v1054 = vadd.f32 %v1052, %v1053
    %v1055 = vrot.slane %v1054, 1
    %v1056 = vadd.f32 %v1054, %v1055
    %v1057 = vadd.f32 %v942, %v946
    %v1058 = vadd.f32 %v1057, %v952
    %v1059 = vadd.f32 %v1058, %v956
    %v1060 = vrot.slane %v1059, 4
    %v1061 = vadd.f32 %v1059, %v1060
    %v1062 = vrot.slane %v1061, 2
    %v1063 = vadd.f32 %v1061, %v1062
    %v1064 = vrot.slane %v1063, 1
    %v1065 = vadd.f32 %v1063, %v1064
    %v1066 = vadd.f32 %v944, %v948
    %v1067 = vadd.f32 %v1066, %v954
    %v1068 = vadd.f32 %v1067, %v958
    %v1069 = vrot.slane %v1068, 4
    %v1070 = vadd.f32 %v1068, %v1069
    %v1071 = vrot.slane %v1070, 2
    %v1072 = vadd.f32 %v1070, %v1071
    %v1073 = vrot.slane %v1072, 1
    %v1074 = vadd.f32 %v1072, %v1073
    %v1075 = vadd.f32 %v995, %v999
    %v1076 = vadd.f32 %v1075, %v1005
    %v1077 = vadd.f32 %v1076, %v1009
    %v1078 = vrot.slane %v1077, 4
    %v1079 = vadd.f32 %v1077, %v1078
    %v1080 = vrot.slane %v1079, 2
    %v1081 = vadd.f32 %v1079, %v1080
    %v1082 = vrot.slane %v1081, 1
    %v1083 = vadd.f32 %v1081, %v1082
    %v1084 = vadd.f32 %v997, %v1001
    %v1085 = vadd.f32 %v1084, %v1007
    %v1086 = vadd.f32 %v1085, %v1011
    %v1087 = vrot.slane %v1086, 4
    %v1088 = vadd.f32 %v1086, %v1087
    %v1089 = vrot.slane %v1088, 2
    %v1090 = vadd.f32 %v1088, %v1089
    %v1091 = vrot.slane %v1090, 1
    %v1092 = vadd.f32 %v1090, %v1091
    %v1093 = vmul.f32 %v1029, %v196
    %v1094 = vmul.f32 %v1038, %v196
    %v1095 = vmul.f32 %v1047, %v196
    %v1096 = vmul.f32 %v1056, %v196
    %v1097 = vmul.f32 %v1065, %v196
    %v1098 = vmul.f32 %v1074, %v196
    %v1099 = vmul.f32 %v1083, %v196
    %v1100 = vmul.f32 %v1092, %v196
    %v1101 = vsub.f32 %v836, %v1093
    %v1102 = vsub.f32 %v838, %v1094
    %v1103 = vsub.f32 %v889, %v1095
    %v1104 = vsub.f32 %v891, %v1096
    %v1105 = vsub.f32 %v942, %v1097
    %v1106 = vsub.f32 %v944, %v1098
    %v1107 = vsub.f32 %v995, %v1099
    %v1108 = vsub.f32 %v997, %v1100
    %v1109 = vsub.f32 %v840, %v1093
    %v1110 = vsub.f32 %v842, %v1094
    %v1111 = vsub.f32 %v893, %v1095
    %v1112 = vsub.f32 %v895, %v1096
    %v1113 = vsub.f32 %v946, %v1097
    %v1114 = vsub.f32 %v948, %v1098
    %v1115 = vsub.f32 %v999, %v1099
    %v1116 = vsub.f32 %v1001, %v1100
    %v1117 = vsub.f32 %v846, %v1093
    %v1118 = vsub.f32 %v848, %v1094
    %v1119 = vsub.f32 %v899, %v1095
    %v1120 = vsub.f32 %v901, %v1096
    %v1121 = vsub.f32 %v952, %v1097
    %v1122 = vsub.f32 %v954, %v1098
    %v1123 = vsub.f32 %v1005, %v1099
    %v1124 = vsub.f32 %v1007, %v1100
    %v1125 = vsub.f32 %v850, %v1093
    %v1126 = vsub.f32 %v852, %v1094
    %v1127 = vsub.f32 %v903, %v1095
    %v1128 = vsub.f32 %v905, %v1096
    %v1129 = vsub.f32 %v956, %v1097
    %v1130 = vsub.f32 %v958, %v1098
    %v1131 = vsub.f32 %v1009, %v1099
    %v1132 = vsub.f32 %v1011, %v1100
    %v1133 = vmul.f32 %v1101, %v1101
    %v1134 = vmul.f32 %v1102, %v1102
    %v1135 = vmul.f32 %v1103, %v1103
    %v1136 = vmul.f32 %v1104, %v1104
    %v1137 = vmul.f32 %v1105, %v1105
    %v1138 = vmul.f32 %v1106, %v1106
    %v1139 = vmul.f32 %v1107, %v1107
    %v1140 = vmul.f32 %v1108, %v1108
    %v1141 = vmul.f32 %v1109, %v1109
    %v1142 = vmul.f32 %v1110, %v1110
    %v1143 = vmul.f32 %v1111, %v1111
    %v1144 = vmul.f32 %v1112, %v1112
    %v1145 = vmul.f32 %v1113, %v1113
    %v1146 = vmul.f32 %v1114, %v1114
    %v1147 = vmul.f32 %v1115, %v1115
    %v1148 = vmul.f32 %v1116, %v1116
    %v1149 = vmul.f32 %v1117, %v1117
    %v1150 = vmul.f32 %v1118, %v1118
    %v1151 = vmul.f32 %v1119, %v1119
    %v1152 = vmul.f32 %v1120, %v1120
    %v1153 = vmul.f32 %v1121, %v1121
    %v1154 = vmul.f32 %v1122, %v1122
    %v1155 = vmul.f32 %v1123, %v1123
    %v1156 = vmul.f32 %v1124, %v1124
    %v1157 = vmul.f32 %v1125, %v1125
    %v1158 = vmul.f32 %v1126, %v1126
    %v1159 = vmul.f32 %v1127, %v1127
    %v1160 = vmul.f32 %v1128, %v1128
    %v1161 = vmul.f32 %v1129, %v1129
    %v1162 = vmul.f32 %v1130, %v1130
    %v1163 = vmul.f32 %v1131, %v1131
    %v1164 = vmul.f32 %v1132, %v1132
    %v1165 = vadd.f32 %v1133, %v1141
    %v1166 = vadd.f32 %v1165, %v1149
    %v1167 = vadd.f32 %v1166, %v1157
    %v1168 = vrot.slane %v1167, 4
    %v1169 = vadd.f32 %v1167, %v1168
    %v1170 = vrot.slane %v1169, 2
    %v1171 = vadd.f32 %v1169, %v1170
    %v1172 = vrot.slane %v1171, 1
    %v1173 = vadd.f32 %v1171, %v1172
    %v1174 = vadd.f32 %v1134, %v1142
    %v1175 = vadd.f32 %v1174, %v1150
    %v1176 = vadd.f32 %v1175, %v1158
    %v1177 = vrot.slane %v1176, 4
    %v1178 = vadd.f32 %v1176, %v1177
    %v1179 = vrot.slane %v1178, 2
    %v1180 = vadd.f32 %v1178, %v1179
    %v1181 = vrot.slane %v1180, 1
    %v1182 = vadd.f32 %v1180, %v1181
    %v1183 = vadd.f32 %v1135, %v1143
    %v1184 = vadd.f32 %v1183, %v1151
    %v1185 = vadd.f32 %v1184, %v1159
    %v1186 = vrot.slane %v1185, 4
    %v1187 = vadd.f32 %v1185, %v1186
    %v1188 = vrot.slane %v1187, 2
    %v1189 = vadd.f32 %v1187, %v1188
    %v1190 = vrot.slane %v1189, 1
    %v1191 = vadd.f32 %v1189, %v1190
    %v1192 = vadd.f32 %v1136, %v1144
    %v1193 = vadd.f32 %v1192, %v1152
    %v1194 = vadd.f32 %v1193, %v1160
    %v1195 = vrot.slane %v1194, 4
    %v1196 = vadd.f32 %v1194, %v1195
    %v1197 = vrot.slane %v1196, 2
    %v1198 = vadd.f32 %v1196, %v1197
    %v1199 = vrot.slane %v1198, 1
    %v1200 = vadd.f32 %v1198, %v1199
    %v1201 = vadd.f32 %v1137, %v1145
    %v1202 = vadd.f32 %v1201, %v1153
    %v1203 = vadd.f32 %v1202, %v1161
    %v1204 = vrot.slane %v1203, 4
    %v1205 = vadd.f32 %v1203, %v1204
    %v1206 = vrot.slane %v1205, 2
    %v1207 = vadd.f32 %v1205, %v1206
    %v1208 = vrot.slane %v1207, 1
    %v1209 = vadd.f32 %v1207, %v1208
    %v1210 = vadd.f32 %v1138, %v1146
    %v1211 = vadd.f32 %v1210, %v1154
    %v1212 = vadd.f32 %v1211, %v1162
    %v1213 = vrot.slane %v1212, 4
    %v1214 = vadd.f32 %v1212, %v1213
    %v1215 = vrot.slane %v1214, 2
    %v1216 = vadd.f32 %v1214, %v1215
    %v1217 = vrot.slane %v1216, 1
    %v1218 = vadd.f32 %v1216, %v1217
    %v1219 = vadd.f32 %v1139, %v1147
    %v1220 = vadd.f32 %v1219, %v1155
    %v1221 = vadd.f32 %v1220, %v1163
    %v1222 = vrot.slane %v1221, 4
    %v1223 = vadd.f32 %v1221, %v1222
    %v1224 = vrot.slane %v1223, 2
    %v1225 = vadd.f32 %v1223, %v1224
    %v1226 = vrot.slane %v1225, 1
    %v1227 = vadd.f32 %v1225, %v1226
    %v1228 = vadd.f32 %v1140, %v1148
    %v1229 = vadd.f32 %v1228, %v1156
    %v1230 = vadd.f32 %v1229, %v1164
    %v1231 = vrot.slane %v1230, 4
    %v1232 = vadd.f32 %v1230, %v1231
    %v1233 = vrot.slane %v1232, 2
    %v1234 = vadd.f32 %v1232, %v1233
    %v1235 = vrot.slane %v1234, 1
    %v1236 = vadd.f32 %v1234, %v1235
    %v1237 = vmul.f32 %v1173, %v196
    %v1238 = vmul.f32 %v1182, %v196
    %v1239 = vmul.f32 %v1191, %v196
    %v1240 = vmul.f32 %v1200, %v196
    %v1241 = vmul.f32 %v1209, %v196
    %v1242 = vmul.f32 %v1218, %v196
    %v1243 = vmul.f32 %v1227, %v196
    %v1244 = vmul.f32 %v1236, %v196
    %v1245 = vadd.f32 %v1237, 1e-05
    %v1246 = vadd.f32 %v1238, 1e-05
    %v1247 = vadd.f32 %v1239, 1e-05
    %v1248 = vadd.f32 %v1240, 1e-05
    %v1249 = vadd.f32 %v1241, 1e-05
    %v1250 = vadd.f32 %v1242, 1e-05
    %v1251 = vadd.f32 %v1243, 1e-05
    %v1252 = vadd.f32 %v1244, 1e-05
    %v1253 = vrsqrt.pop %v1245
    %v1254 = vrsqrt.pop %v1246
    %v1255 = vrsqrt.pop %v1247
    %v1256 = vrsqrt.pop %v1248
    %v1257 = vrsqrt.pop %v1249
    %v1258 = vrsqrt.pop %v1250
    %v1259 = vrsqrt.pop %v1251
    %v1260 = vrsqrt.pop %v1252
    %v1269 = vcombine.low %v1253, %v1254
    %v1270 = vcombine.low %v1255, %v1256
    %v1271 = vcombine.low %v1257, %v1258
    %v1272 = vcombine.low %v1259, %v1260
    %v1274 = vunpack.c.l.s4 1966171168
    %v1275 = vunpack.c.0.s8 %v1274
    %v1276 = vlaneseq
    %v1277 = vshrl.u32 %v1276, 7
    %v1278 = vsub.s32 %v1275, %v1277
    %v1279 = vrot.slane %v1269, %v1278
    %v1281 = vunpack.c.l.s4 1966171168
    %v1282 = vunpack.c.0.s8 %v1281
    %v1283 = vlaneseq
    %v1284 = vshrl.u32 %v1283, 7
    %v1285 = vsub.s32 %v1282, %v1284
    %v1286 = vrot.slane %v1270, %v1285
    %v1288 = vunpack.c.l.s4 1966171168
    %v1289 = vunpack.c.0.s8 %v1288
    %v1290 = vlaneseq
    %v1291 = vshrl.u32 %v1290, 7
    %v1292 = vsub.s32 %v1289, %v1291
    %v1293 = vrot.slane %v1271, %v1292
    %v1295 = vunpack.c.l.s4 1966171168
    %v1296 = vunpack.c.0.s8 %v1295
    %v1297 = vlaneseq
    %v1298 = vshrl.u32 %v1297, 7
    %v1299 = vsub.s32 %v1296, %v1298
    %v1300 = vrot.slane %v1272, %v1299
    %v1301 = vcombine.low %v1279, %v1286
    %v1302 = vcombine.low %v1293, %v1300
    %v1304 = vunpack.c.l.s4 1966171168
    %v1305 = vunpack.c.0.s8 %v1304
    %v1306 = vlaneseq
    %v1307 = vshrl.u32 %v1306, 7
    %v1308 = vsub.s32 %v1305, %v1307
    %v1309 = vrot.slane %v1301, %v1308
    %v1311 = vunpack.c.l.s4 1966171168
    %v1312 = vunpack.c.0.s8 %v1311
    %v1313 = vlaneseq
    %v1314 = vshrl.u32 %v1313, 7
    %v1315 = vsub.s32 %v1312, %v1314
    %v1316 = vrot.slane %v1302, %v1315
    %v1317 = vcombine.low %v1309, %v1316
    %v1319 = vmul.f32 %v1016, %v1317
    %v1321 = vlaneseq
    %v1322 = vshrl.u32 %v1321, 7
    %v1323 = vsub.s32 0, %v1322
    %v1324 = vrot.slane %v1319, %v1323
    %v1325 = vlaneseq
    %v1326 = vshrl.u32 %v1325, 7
    %v1327 = vsub.s32 1, %v1326
    %v1328 = vrot.slane %v1319, %v1327
    %v1329 = vlaneseq
    %v1330 = vshrl.u32 %v1329, 7
    %v1331 = vsub.s32 2, %v1330
    %v1332 = vrot.slane %v1319, %v1331
    %v1333 = vlaneseq
    %v1334 = vshrl.u32 %v1333, 7
    %v1335 = vsub.s32 3, %v1334
    %v1336 = vrot.slane %v1319, %v1335
    %v1337 = vlaneseq
    %v1338 = vshrl.u32 %v1337, 7
    %v1339 = vsub.s32 4, %v1338
    %v1340 = vrot.slane %v1319, %v1339
    %v1341 = vlaneseq
    %v1342 = vshrl.u32 %v1341, 7
    %v1343 = vsub.s32 5, %v1342
    %v1344 = vrot.slane %v1319, %v1343
    %v1345 = vlaneseq
    %v1346 = vshrl.u32 %v1345, 7
    %v1347 = vsub.s32 6, %v1346
    %v1348 = vrot.slane %v1319, %v1347
    %v1349 = vlaneseq
    %v1350 = vshrl.u32 %v1349, 7
    %v1351 = vsub.s32 7, %v1350
    %v1352 = vrot.slane %v1319, %v1351
    %v1361 = vmul.f32 %v1101, %v1324
    %v1362 = vmul.f32 %v1102, %v1328
    %v1363 = vmul.f32 %v1103, %v1332
    %v1364 = vmul.f32 %v1104, %v1336
    %v1365 = vmul.f32 %v1105, %v1340
    %v1366 = vmul.f32 %v1106, %v1344
    %v1367 = vmul.f32 %v1107, %v1348
    %v1368 = vmul.f32 %v1108, %v1352
    %v1369 = vmul.f32 %v1109, %v1324
    %v1370 = vmul.f32 %v1110, %v1328
    %v1371 = vmul.f32 %v1111, %v1332
    %v1372 = vmul.f32 %v1112, %v1336
    %v1373 = vmul.f32 %v1113, %v1340
    %v1374 = vmul.f32 %v1114, %v1344
    %v1375 = vmul.f32 %v1115, %v1348
    %v1376 = vmul.f32 %v1116, %v1352
    %v1377 = vmul.f32 %v1117, %v1324
    %v1378 = vmul.f32 %v1118, %v1328
    %v1379 = vmul.f32 %v1119, %v1332
    %v1380 = vmul.f32 %v1120, %v1336
    %v1381 = vmul.f32 %v1121, %v1340
    %v1382 = vmul.f32 %v1122, %v1344
    %v1383 = vmul.f32 %v1123, %v1348
    %v1384 = vmul.f32 %v1124, %v1352
    %v1385 = vmul.f32 %v1125, %v1324
    %v1386 = vmul.f32 %v1126, %v1328
    %v1387 = vmul.f32 %v1127, %v1332
    %v1388 = vmul.f32 %v1128, %v1336
    %v1389 = vmul.f32 %v1129, %v1340
    %v1390 = vmul.f32 %v1130, %v1344
    %v1391 = vmul.f32 %v1131, %v1348
    %v1392 = vmul.f32 %v1132, %v1352
    %v1394 = vlaneseq
    %v1395 = vshrl.u32 %v1394, 7
    %v1396 = vsub.s32 0, %v1395
    %v1397 = vrot.slane %v1020, %v1396
    %v1398 = vlaneseq
    %v1399 = vshrl.u32 %v1398, 7
    %v1400 = vsub.s32 1, %v1399
    %v1401 = vrot.slane %v1020, %v1400
    %v1402 = vlaneseq
    %v1403 = vshrl.u32 %v1402, 7
    %v1404 = vsub.s32 2, %v1403
    %v1405 = vrot.slane %v1020, %v1404
    %v1406 = vlaneseq
    %v1407 = vshrl.u32 %v1406, 7
    %v1408 = vsub.s32 3, %v1407
    %v1409 = vrot.slane %v1020, %v1408
    %v1410 = vlaneseq
    %v1411 = vshrl.u32 %v1410, 7
    %v1412 = vsub.s32 4, %v1411
    %v1413 = vrot.slane %v1020, %v1412
    %v1414 = vlaneseq
    %v1415 = vshrl.u32 %v1414, 7
    %v1416 = vsub.s32 5, %v1415
    %v1417 = vrot.slane %v1020, %v1416
    %v1418 = vlaneseq
    %v1419 = vshrl.u32 %v1418, 7
    %v1420 = vsub.s32 6, %v1419
    %v1421 = vrot.slane %v1020, %v1420
    %v1422 = vlaneseq
    %v1423 = vshrl.u32 %v1422, 7
    %v1424 = vsub.s32 7, %v1423
    %v1425 = vrot.slane %v1020, %v1424
    %v1434 = vadd.f32 %v1361, %v1397
    %v1435 = vadd.f32 %v1362, %v1401
    %v1436 = vadd.f32 %v1363, %v1405
    %v1437 = vadd.f32 %v1364, %v1409
    %v1438 = vadd.f32 %v1365, %v1413
    %v1439 = vadd.f32 %v1366, %v1417
    %v1440 = vadd.f32 %v1367, %v1421
    %v1441 = vadd.f32 %v1368, %v1425
    %v1442 = vadd.f32 %v1369, %v1397
    %v1443 = vadd.f32 %v1370, %v1401
    %v1444 = vadd.f32 %v1371, %v1405
    %v1445 = vadd.f32 %v1372, %v1409
    %v1446 = vadd.f32 %v1373, %v1413
    %v1447 = vadd.f32 %v1374, %v1417
    %v1448 = vadd.f32 %v1375, %v1421
    %v1449 = vadd.f32 %v1376, %v1425
    %v1450 = vadd.f32 %v1377, %v1397
    %v1451 = vadd.f32 %v1378, %v1401
    %v1452 = vadd.f32 %v1379, %v1405
    %v1453 = vadd.f32 %v1380, %v1409
    %v1454 = vadd.f32 %v1381, %v1413
    %v1455 = vadd.f32 %v1382, %v1417
    %v1456 = vadd.f32 %v1383, %v1421
    %v1457 = vadd.f32 %v1384, %v1425
    %v1458 = vadd.f32 %v1385, %v1397
    %v1459 = vadd.f32 %v1386, %v1401
    %v1460 = vadd.f32 %v1387, %v1405
    %v1461 = vadd.f32 %v1388, %v1409
    %v1462 = vadd.f32 %v1389, %v1413
    %v1463 = vadd.f32 %v1390, %v1417
    %v1464 = vadd.f32 %v1391, %v1421
    %v1465 = vadd.f32 %v1392, %v1425
    %v1466 = vmax.f32 %v1434, 0.0
    %v1467 = vmax.f32 %v1435, 0.0
    %v1468 = vmax.f32 %v1436, 0.0
    %v1469 = vmax.f32 %v1437, 0.0
    %v1470 = vmax.f32 %v1438, 0.0
    %v1471 = vmax.f32 %v1439, 0.0
    %v1472 = vmax.f32 %v1440, 0.0
    %v1473 = vmax.f32 %v1441, 0.0
    %v1474 = vmax.f32 %v1442, 0.0
    %v1475 = vmax.f32 %v1443, 0.0
    %v1476 = vmax.f32 %v1444, 0.0
    %v1477 = vmax.f32 %v1445, 0.0
    %v1478 = vmax.f32 %v1446, 0.0
    %v1479 = vmax.f32 %v1447, 0.0
    %v1480 = vmax.f32 %v1448, 0.0
    %v1481 = vmax.f32 %v1449, 0.0
    %v1482 = vmax.f32 %v1450, 0.0
    %v1483 = vmax.f32 %v1451, 0.0
    %v1484 = vmax.f32 %v1452, 0.0
    %v1485 = vmax.f32 %v1453, 0.0
    %v1486 = vmax.f32 %v1454, 0.0
    %v1487 = vmax.f32 %v1455, 0.0
    %v1488 = vmax.f32 %v1456, 0.0
    %v1489 = vmax.f32 %v1457, 0.0
    %v1490 = vmax.f32 %v1458, 0.0
    %v1491 = vmax.f32 %v1459, 0.0
    %v1492 = vmax.f32 %v1460, 0.0
    %v1493 = vmax.f32 %v1461, 0.0
    %v1494 = vmax.f32 %v1462, 0.0
    %v1495 = vmax.f32 %v1463, 0.0
    %v1496 = vmax.f32 %v1464, 0.0
    %v1497 = vmax.f32 %v1465, 0.0
    %v1498 = vmax.f32 %v1466, %v1474
    %v1499 = vrot.slane %v1498, 4
    %v1500 = vmax.f32 %v1498, %v1499
    %v1501 = vrot.slane %v1500, 2
    %v1502 = vmax.f32 %v1500, %v1501
    %v1503 = vrot.slane %v1502, 1
    %v1504 = vmax.f32 %v1502, %v1503
    %v1505 = vmax.f32 %v1467, %v1475
    %v1506 = vrot.slane %v1505, 4
    %v1507 = vmax.f32 %v1505, %v1506
    %v1508 = vrot.slane %v1507, 2
    %v1509 = vmax.f32 %v1507, %v1508
    %v1510 = vrot.slane %v1509, 1
    %v1511 = vmax.f32 %v1509, %v1510
    %v1512 = vmax.f32 %v1468, %v1476
    %v1513 = vrot.slane %v1512, 4
    %v1514 = vmax.f32 %v1512, %v1513
    %v1515 = vrot.slane %v1514, 2
    %v1516 = vmax.f32 %v1514, %v1515
    %v1517 = vrot.slane %v1516, 1
    %v1518 = vmax.f32 %v1516, %v1517
    %v1519 = vmax.f32 %v1469, %v1477
    %v1520 = vrot.slane %v1519, 4
    %v1521 = vmax.f32 %v1519, %v1520
    %v1522 = vrot.slane %v1521, 2
    %v1523 = vmax.f32 %v1521, %v1522
    %v1524 = vrot.slane %v1523, 1
    %v1525 = vmax.f32 %v1523, %v1524
    %v1526 = vmax.f32 %v1470, %v1478
    %v1527 = vrot.slane %v1526, 4
    %v1528 = vmax.f32 %v1526, %v1527
    %v1529 = vrot.slane %v1528, 2
    %v1530 = vmax.f32 %v1528, %v1529
    %v1531 = vrot.slane %v1530, 1
    %v1532 = vmax.f32 %v1530, %v1531
    %v1533 = vmax.f32 %v1471, %v1479
    %v1534 = vrot.slane %v1533, 4
    %v1535 = vmax.f32 %v1533, %v1534
    %v1536 = vrot.slane %v1535, 2
    %v1537 = vmax.f32 %v1535, %v1536
    %v1538 = vrot.slane %v1537, 1
    %v1539 = vmax.f32 %v1537, %v1538
    %v1540 = vmax.f32 %v1472, %v1480
    %v1541 = vrot.slane %v1540, 4
    %v1542 = vmax.f32 %v1540, %v1541
    %v1543 = vrot.slane %v1542, 2
    %v1544 = vmax.f32 %v1542, %v1543
    %v1545 = vrot.slane %v1544, 1
    %v1546 = vmax.f32 %v1544, %v1545
    %v1547 = vmax.f32 %v1473, %v1481
    %v1548 = vrot.slane %v1547, 4
    %v1549 = vmax.f32 %v1547, %v1548
    %v1550 = vrot.slane %v1549, 2
    %v1551 = vmax.f32 %v1549, %v1550
    %v1552 = vrot.slane %v1551, 1
    %v1553 = vmax.f32 %v1551, %v1552
    %v1554 = vmax.f32 %v1482, %v1490
    %v1555 = vrot.slane %v1554, 4
    %v1556 = vmax.f32 %v1554, %v1555
    %v1557 = vrot.slane %v1556, 2
    %v1558 = vmax.f32 %v1556, %v1557
    %v1559 = vrot.slane %v1558, 1
    %v1560 = vmax.f32 %v1558, %v1559
    %v1561 = vmax.f32 %v1483, %v1491
    %v1562 = vrot.slane %v1561, 4
    %v1563 = vmax.f32 %v1561, %v1562
    %v1564 = vrot.slane %v1563, 2
    %v1565 = vmax.f32 %v1563, %v1564
    %v1566 = vrot.slane %v1565, 1
    %v1567 = vmax.f32 %v1565, %v1566
    %v1568 = vmax.f32 %v1484, %v1492
    %v1569 = vrot.slane %v1568, 4
    %v1570 = vmax.f32 %v1568, %v1569
    %v1571 = vrot.slane %v1570, 2
    %v1572 = vmax.f32 %v1570, %v1571
    %v1573 = vrot.slane %v1572, 1
    %v1574 = vmax.f32 %v1572, %v1573
    %v1575 = vmax.f32 %v1485, %v1493
    %v1576 = vrot.slane %v1575, 4
    %v1577 = vmax.f32 %v1575, %v1576
    %v1578 = vrot.slane %v1577, 2
    %v1579 = vmax.f32 %v1577, %v1578
    %v1580 = vrot.slane %v1579, 1
    %v1581 = vmax.f32 %v1579, %v1580
    %v1582 = vmax.f32 %v1486, %v1494
    %v1583 = vrot.slane %v1582, 4
    %v1584 = vmax.f32 %v1582, %v1583
    %v1585 = vrot.slane %v1584, 2
    %v1586 = vmax.f32 %v1584, %v1585
    %v1587 = vrot.slane %v1586, 1
    %v1588 = vmax.f32 %v1586, %v1587
    %v1589 = vmax.f32 %v1487, %v1495
    %v1590 = vrot.slane %v1589, 4
    %v1591 = vmax.f32 %v1589, %v1590
    %v1592 = vrot.slane %v1591, 2
    %v1593 = vmax.f32 %v1591, %v1592
    %v1594 = vrot.slane %v1593, 1
    %v1595 = vmax.f32 %v1593, %v1594
    %v1596 = vmax.f32 %v1488, %v1496
    %v1597 = vrot.slane %v1596, 4
    %v1598 = vmax.f32 %v1596, %v1597
    %v1599 = vrot.slane %v1598, 2
    %v1600 = vmax.f32 %v1598, %v1599
    %v1601 = vrot.slane %v1600, 1
    %v1602 = vmax.f32 %v1600, %v1601
    %v1603 = vmax.f32 %v1489, %v1497
    %v1604 = vrot.slane %v1603, 4
    %v1605 = vmax.f32 %v1603, %v1604
    %v1606 = vrot.slane %v1605, 2
    %v1607 = vmax.f32 %v1605, %v1606
    %v1608 = vrot.slane %v1607, 1
    %v1609 = vmax.f32 %v1607, %v1608
    %v1610 = vpack.c.bf16 %v1504, %v1504
    %v1611 = vpack.c.bf16 %v1511, %v1511
    %v1612 = vpack.c.bf16 %v1518, %v1518
    %v1613 = vpack.c.bf16 %v1525, %v1525
    %v1614 = vpack.c.bf16 %v1532, %v1532
    %v1615 = vpack.c.bf16 %v1539, %v1539
    %v1616 = vpack.c.bf16 %v1546, %v1546
    %v1617 = vpack.c.bf16 %v1553, %v1553
    %v1618 = vpack.c.bf16 %v1560, %v1560
    %v1619 = vpack.c.bf16 %v1567, %v1567
    %v1620 = vpack.c.bf16 %v1574, %v1574
    %v1621 = vpack.c.bf16 %v1581, %v1581
    %v1622 = vpack.c.bf16 %v1588, %v1588
    %v1623 = vpack.c.bf16 %v1595, %v1595
    %v1624 = vpack.c.bf16 %v1602, %v1602
    %v1625 = vpack.c.bf16 %v1609, %v1609
    %v1626 = vld [vmem:[#allocation7] sm:$0xf]
    %v1627 = vld [vmem:[#allocation7 + $0x4] sm:$0xf]
    %v1628 = vld [vmem:[#allocation7 + $0x8] sm:$0xf]
    %v1629 = vld [vmem:[#allocation7 + $0xc] sm:$0xf]
    %v1630 = vld [vmem:[#allocation7 + $0x10] sm:$0xf]
    %v1631 = vld [vmem:[#allocation7 + $0x14] sm:$0xf]
    %v1632 = vld [vmem:[#allocation7 + $0x18] sm:$0xf]
    %v1633 = vld [vmem:[#allocation7 + $0x1c] sm:$0xf]
    %v1634 = vld [vmem:[#allocation7 + $0x20] sm:$0xf]
    %v1635 = vld [vmem:[#allocation7 + $0x24] sm:$0xf]
    %v1636 = vld [vmem:[#allocation7 + $0x28] sm:$0xf]
    %v1637 = vld [vmem:[#allocation7 + $0x2c] sm:$0xf]
    %v1638 = vld [vmem:[#allocation7 + $0x30] sm:$0xf]
    %v1639 = vld [vmem:[#allocation7 + $0x34] sm:$0xf]
    %v1640 = vld [vmem:[#allocation7 + $0x38] sm:$0xf]
    %v1641 = vld [vmem:[#allocation7 + $0x3c] sm:$0xf]
    %v1642 = vld [vmem:[#allocation7 + $0x40] sm:$0xf]
    %v1643 = vld [vmem:[#allocation7 + $0x44] sm:$0xf]
    %v1644 = vld [vmem:[#allocation7 + $0x48] sm:$0xf]
    %v1645 = vld [vmem:[#allocation7 + $0x4c] sm:$0xf]
    %v1646 = vld [vmem:[#allocation7 + $0x50] sm:$0xf]
    %v1647 = vld [vmem:[#allocation7 + $0x54] sm:$0xf]
    %v1648 = vld [vmem:[#allocation7 + $0x58] sm:$0xf]
    %v1649 = vld [vmem:[#allocation7 + $0x5c] sm:$0xf]
    %v1650 = vld [vmem:[#allocation7 + $0x60] sm:$0xf]
    %v1651 = vld [vmem:[#allocation7 + $0x64] sm:$0xf]
    %v1652 = vld [vmem:[#allocation7 + $0x68] sm:$0xf]
    %v1653 = vld [vmem:[#allocation7 + $0x6c] sm:$0xf]
    %v1654 = vld [vmem:[#allocation7 + $0x70] sm:$0xf]
    %v1655 = vld [vmem:[#allocation7 + $0x74] sm:$0xf]
    %v1656 = vld [vmem:[#allocation7 + $0x78] sm:$0xf]
    %v1657 = vld [vmem:[#allocation7 + $0x7c] sm:$0xf]
    %v1658 = vld [vmem:[#allocation7 + $0x80] sm:$0xf]
    %v1659 = vld [vmem:[#allocation7 + $0x84] sm:$0xf]
    %v1660 = vld [vmem:[#allocation7 + $0x88] sm:$0xf]
    %v1661 = vld [vmem:[#allocation7 + $0x8c] sm:$0xf]
    %v1662 = vld [vmem:[#allocation7 + $0x90] sm:$0xf]
    %v1663 = vld [vmem:[#allocation7 + $0x94] sm:$0xf]
    %v1664 = vld [vmem:[#allocation7 + $0x98] sm:$0xf]
    %v1665 = vld [vmem:[#allocation7 + $0x9c] sm:$0xf]
    %v1666 = vld [vmem:[#allocation7 + $0xa0] sm:$0xf]
    %v1667 = vld [vmem:[#allocation7 + $0xa4] sm:$0xf]
    %v1668 = vld [vmem:[#allocation7 + $0xa8] sm:$0xf]
    %v1669 = vld [vmem:[#allocation7 + $0xac] sm:$0xf]
    %v1670 = vld [vmem:[#allocation7 + $0xb0] sm:$0xf]
    %v1671 = vld [vmem:[#allocation7 + $0xb4] sm:$0xf]
    %v1672 = vld [vmem:[#allocation7 + $0xb8] sm:$0xf]
    %v1673 = vld [vmem:[#allocation7 + $0xbc] sm:$0xf]
    %v1674 = vld [vmem:[#allocation7 + $0xc0] sm:$0xf]
    %v1675 = vld [vmem:[#allocation7 + $0xc4] sm:$0xf]
    %v1676 = vld [vmem:[#allocation7 + $0xc8] sm:$0xf]
    %v1677 = vld [vmem:[#allocation7 + $0xcc] sm:$0xf]
    %v1678 = vld [vmem:[#allocation7 + $0xd0] sm:$0xf]
    %v1679 = vld [vmem:[#allocation7 + $0xd4] sm:$0xf]
    %v1680 = vld [vmem:[#allocation7 + $0xd8] sm:$0xf]
    %v1681 = vld [vmem:[#allocation7 + $0xdc] sm:$0xf]
    %v1682 = vld [vmem:[#allocation7 + $0xe0] sm:$0xf]
    %v1683 = vld [vmem:[#allocation7 + $0xe4] sm:$0xf]
    %v1684 = vld [vmem:[#allocation7 + $0xe8] sm:$0xf]
    %v1685 = vld [vmem:[#allocation7 + $0xec] sm:$0xf]
    %v1686 = vld [vmem:[#allocation7 + $0xf0] sm:$0xf]
    %v1687 = vld [vmem:[#allocation7 + $0xf4] sm:$0xf]
    %v1688 = vld [vmem:[#allocation7 + $0xf8] sm:$0xf]
    %v1689 = vld [vmem:[#allocation7 + $0xfc] sm:$0xf]
    %v1690 = vld [vmem:[#allocation7 + $0x100] sm:$0xf]
    %v1691 = vld [vmem:[#allocation7 + $0x104] sm:$0xf]
    %v1692 = vld [vmem:[#allocation7 + $0x108] sm:$0xf]
    %v1693 = vld [vmem:[#allocation7 + $0x10c] sm:$0xf]
    %v1694 = vld [vmem:[#allocation7 + $0x110] sm:$0xf]
    %v1695 = vld [vmem:[#allocation7 + $0x114] sm:$0xf]
    %v1696 = vld [vmem:[#allocation7 + $0x118] sm:$0xf]
    %v1697 = vld [vmem:[#allocation7 + $0x11c] sm:$0xf]
    %v1698 = vld [vmem:[#allocation7 + $0x120] sm:$0xf]
    %v1699 = vld [vmem:[#allocation7 + $0x124] sm:$0xf]
    %v1700 = vld [vmem:[#allocation7 + $0x128] sm:$0xf]
    %v1701 = vld [vmem:[#allocation7 + $0x12c] sm:$0xf]
    %v1702 = vld [vmem:[#allocation7 + $0x130] sm:$0xf]
    %v1703 = vld [vmem:[#allocation7 + $0x134] sm:$0xf]
    %v1704 = vld [vmem:[#allocation7 + $0x138] sm:$0xf]
    %v1705 = vld [vmem:[#allocation7 + $0x13c] sm:$0xf]
    %v1706 = vld [vmem:[#allocation7 + $0x140] sm:$0xf]
    %v1707 = vld [vmem:[#allocation7 + $0x144] sm:$0xf]
    %v1708 = vld [vmem:[#allocation7 + $0x148] sm:$0xf]
    %v1709 = vld [vmem:[#allocation7 + $0x14c] sm:$0xf]
    %v1710 = vld [vmem:[#allocation7 + $0x150] sm:$0xf]
    %v1711 = vld [vmem:[#allocation7 + $0x154] sm:$0xf]
    %v1712 = vld [vmem:[#allocation7 + $0x158] sm:$0xf]
    %v1713 = vld [vmem:[#allocation7 + $0x15c] sm:$0xf]
    %v1714 = vld [vmem:[#allocation7 + $0x160] sm:$0xf]
    %v1715 = vld [vmem:[#allocation7 + $0x164] sm:$0xf]
    %v1716 = vld [vmem:[#allocation7 + $0x168] sm:$0xf]
    %v1717 = vld [vmem:[#allocation7 + $0x16c] sm:$0xf]
    %v1718 = vld [vmem:[#allocation7 + $0x170] sm:$0xf]
    %v1719 = vld [vmem:[#allocation7 + $0x174] sm:$0xf]
    %v1720 = vld [vmem:[#allocation7 + $0x178] sm:$0xf]
    %v1721 = vld [vmem:[#allocation7 + $0x17c] sm:$0xf]
    %v1722 = vld [vmem:[#allocation7 + $0x180] sm:$0xf]
    %v1723 = vld [vmem:[#allocation7 + $0x184] sm:$0xf]
    %v1724 = vld [vmem:[#allocation7 + $0x188] sm:$0xf]
    %v1725 = vld [vmem:[#allocation7 + $0x18c] sm:$0xf]
    %v1726 = vld [vmem:[#allocation7 + $0x190] sm:$0xf]
    %v1727 = vld [vmem:[#allocation7 + $0x194] sm:$0xf]
    %v1728 = vld [vmem:[#allocation7 + $0x198] sm:$0xf]
    %v1729 = vld [vmem:[#allocation7 + $0x19c] sm:$0xf]
    %v1730 = vld [vmem:[#allocation7 + $0x1a0] sm:$0xf]
    %v1731 = vld [vmem:[#allocation7 + $0x1a4] sm:$0xf]
    %v1732 = vld [vmem:[#allocation7 + $0x1a8] sm:$0xf]
    %v1733 = vld [vmem:[#allocation7 + $0x1ac] sm:$0xf]
    %v1734 = vld [vmem:[#allocation7 + $0x1b0] sm:$0xf]
    %v1735 = vld [vmem:[#allocation7 + $0x1b4] sm:$0xf]
    %v1736 = vld [vmem:[#allocation7 + $0x1b8] sm:$0xf]
    %v1737 = vld [vmem:[#allocation7 + $0x1bc] sm:$0xf]
    %v1738 = vld [vmem:[#allocation7 + $0x1c0] sm:$0xf]
    %v1739 = vld [vmem:[#allocation7 + $0x1c4] sm:$0xf]
    %v1740 = vld [vmem:[#allocation7 + $0x1c8] sm:$0xf]
    %v1741 = vld [vmem:[#allocation7 + $0x1cc] sm:$0xf]
    %v1742 = vld [vmem:[#allocation7 + $0x1d0] sm:$0xf]
    %v1743 = vld [vmem:[#allocation7 + $0x1d4] sm:$0xf]
    %v1744 = vld [vmem:[#allocation7 + $0x1d8] sm:$0xf]
    %v1745 = vld [vmem:[#allocation7 + $0x1dc] sm:$0xf]
    %v1746 = vld [vmem:[#allocation7 + $0x1e0] sm:$0xf]
    %v1747 = vld [vmem:[#allocation7 + $0x1e4] sm:$0xf]
    %v1748 = vld [vmem:[#allocation7 + $0x1e8] sm:$0xf]
    %v1749 = vld [vmem:[#allocation7 + $0x1ec] sm:$0xf]
    %v1750 = vld [vmem:[#allocation7 + $0x1f0] sm:$0xf]
    %v1751 = vld [vmem:[#allocation7 + $0x1f4] sm:$0xf]
    %v1752 = vld [vmem:[#allocation7 + $0x1f8] sm:$0xf]
    %v1753 = vld [vmem:[#allocation7 + $0x1fc] sm:$0xf]
    %v1754 = vld [vmem:[#allocation2 + $0x41] ss:$0 sm:$0xff]
    %v1771 = vunpack.c.l.b16 %v1610
    %v1772 = vunpack.c.l.b16 %v1611
    %v1773 = vunpack.c.l.b16 %v1612
    %v1774 = vunpack.c.l.b16 %v1613
    %v1775 = vunpack.c.l.b16 %v1614
    %v1776 = vunpack.c.l.b16 %v1615
    %v1777 = vunpack.c.l.b16 %v1616
    %v1778 = vunpack.c.l.b16 %v1617
    %v1779 = vunpack.c.l.b16 %v1618
    %v1780 = vunpack.c.l.b16 %v1619
    %v1781 = vunpack.c.l.b16 %v1620
    %v1782 = vunpack.c.l.b16 %v1621
    %v1783 = vunpack.c.l.b16 %v1622
    %v1784 = vunpack.c.l.b16 %v1623
    %v1785 = vunpack.c.l.b16 %v1624
    %v1786 = vunpack.c.l.b16 %v1625
    %vm1787 = vcmask 1041409
    %v1788 = vsel %vm1787, %v1779, %v1771
    %v1789 = vsel %vm1787, %v1780, %v1772
    %v1790 = vsel %vm1787, %v1781, %v1773
    %v1791 = vsel %vm1787, %v1782, %v1774
    %v1792 = vsel %vm1787, %v1783, %v1775
    %v1793 = vsel %vm1787, %v1784, %v1776
    %v1794 = vsel %vm1787, %v1785, %v1777
    %v1795 = vsel %vm1787, %v1786, %v1778
    %v1796 = vpack.c.b16 %v1788, %v1788
    %v1797 = vpack.c.b16 %v1789, %v1789
    %v1798 = vpack.c.b16 %v1790, %v1790
    %v1799 = vpack.c.b16 %v1791, %v1791
    %v1800 = vpack.c.b16 %v1792, %v1792
    %v1801 = vpack.c.b16 %v1793, %v1793
    %v1802 = vpack.c.b16 %v1794, %v1794
    %v1803 = vpack.c.b16 %v1795, %v1795
    %v1940 = vunpack.c.l.b16 %v1626
    %v1941 = vunpack.c.l.b16 %v1627
    %v1942 = vunpack.c.l.b16 %v1628
    %v1943 = vunpack.c.l.b16 %v1629
    %v1944 = vunpack.c.l.b16 %v1630
    %v1945 = vunpack.c.l.b16 %v1631
    %v1946 = vunpack.c.l.b16 %v1632
    %v1947 = vunpack.c.l.b16 %v1633
    %v1948 = vunpack.c.l.b16 %v1634
    %v1949 = vunpack.c.l.b16 %v1635
    %v1950 = vunpack.c.l.b16 %v1636
    %v1951 = vunpack.c.l.b16 %v1637
    %v1952 = vunpack.c.l.b16 %v1638
    %v1953 = vunpack.c.l.b16 %v1639
    %v1954 = vunpack.c.l.b16 %v1640
    %v1955 = vunpack.c.l.b16 %v1641
    %v1956 = vunpack.c.l.b16 %v1642
    %v1957 = vunpack.c.l.b16 %v1643
    %v1958 = vunpack.c.l.b16 %v1644
    %v1959 = vunpack.c.l.b16 %v1645
    %v1960 = vunpack.c.l.b16 %v1646
    %v1961 = vunpack.c.l.b16 %v1647
    %v1962 = vunpack.c.l.b16 %v1648
    %v1963 = vunpack.c.l.b16 %v1649
    %v1964 = vunpack.c.l.b16 %v1650
    %v1965 = vunpack.c.l.b16 %v1651
    %v1966 = vunpack.c.l.b16 %v1652
    %v1967 = vunpack.c.l.b16 %v1653
    %v1968 = vunpack.c.l.b16 %v1654
    %v1969 = vunpack.c.l.b16 %v1655
    %v1970 = vunpack.c.l.b16 %v1656
    %v1971 = vunpack.c.l.b16 %v1657
    %v1972 = vunpack.c.l.b16 %v1658
    %v1973 = vunpack.c.l.b16 %v1659
    %v1974 = vunpack.c.l.b16 %v1660
    %v1975 = vunpack.c.l.b16 %v1661
    %v1976 = vunpack.c.l.b16 %v1662
    %v1977 = vunpack.c.l.b16 %v1663
    %v1978 = vunpack.c.l.b16 %v1664
    %v1979 = vunpack.c.l.b16 %v1665
    %v1980 = vunpack.c.l.b16 %v1666
    %v1981 = vunpack.c.l.b16 %v1667
    %v1982 = vunpack.c.l.b16 %v1668
    %v1983 = vunpack.c.l.b16 %v1669
    %v1984 = vunpack.c.l.b16 %v1670
    %v1985 = vunpack.c.l.b16 %v1671
    %v1986 = vunpack.c.l.b16 %v1672
    %v1987 = vunpack.c.l.b16 %v1673
    %v1988 = vunpack.c.l.b16 %v1674
    %v1989 = vunpack.c.l.b16 %v1675
    %v1990 = vunpack.c.l.b16 %v1676
    %v1991 = vunpack.c.l.b16 %v1677
    %v1992 = vunpack.c.l.b16 %v1678
    %v1993 = vunpack.c.l.b16 %v1679
    %v1994 = vunpack.c.l.b16 %v1680
    %v1995 = vunpack.c.l.b16 %v1681
    %v1996 = vunpack.c.l.b16 %v1682
    %v1997 = vunpack.c.l.b16 %v1683
    %v1998 = vunpack.c.l.b16 %v1684
    %v1999 = vunpack.c.l.b16 %v1685
    %v2000 = vunpack.c.l.b16 %v1686
    %v2001 = vunpack.c.l.b16 %v1687
    %v2002 = vunpack.c.l.b16 %v1688
    %v2003 = vunpack.c.l.b16 %v1689
    %v2004 = vunpack.c.l.b16 %v1690
    %v2005 = vunpack.c.l.b16 %v1691
    %v2006 = vunpack.c.l.b16 %v1692
    %v2007 = vunpack.c.l.b16 %v1693
    %v2008 = vunpack.c.l.b16 %v1694
    %v2009 = vunpack.c.l.b16 %v1695
    %v2010 = vunpack.c.l.b16 %v1696
    %v2011 = vunpack.c.l.b16 %v1697
    %v2012 = vunpack.c.l.b16 %v1698
    %v2013 = vunpack.c.l.b16 %v1699
    %v2014 = vunpack.c.l.b16 %v1700
    %v2015 = vunpack.c.l.b16 %v1701
    %v2016 = vunpack.c.l.b16 %v1702
    %v2017 = vunpack.c.l.b16 %v1703
    %v2018 = vunpack.c.l.b16 %v1704
    %v2019 = vunpack.c.l.b16 %v1705
    %v2020 = vunpack.c.l.b16 %v1706
    %v2021 = vunpack.c.l.b16 %v1707
    %v2022 = vunpack.c.l.b16 %v1708
    %v2023 = vunpack.c.l.b16 %v1709
    %v2024 = vunpack.c.l.b16 %v1710
    %v2025 = vunpack.c.l.b16 %v1711
    %v2026 = vunpack.c.l.b16 %v1712
    %v2027 = vunpack.c.l.b16 %v1713
    %v2028 = vunpack.c.l.b16 %v1714
    %v2029 = vunpack.c.l.b16 %v1715
    %v2030 = vunpack.c.l.b16 %v1716
    %v2031 = vunpack.c.l.b16 %v1717
    %v2032 = vunpack.c.l.b16 %v1718
    %v2033 = vunpack.c.l.b16 %v1719
    %v2034 = vunpack.c.l.b16 %v1720
    %v2035 = vunpack.c.l.b16 %v1721
    %v2036 = vunpack.c.l.b16 %v1722
    %v2037 = vunpack.c.l.b16 %v1723
    %v2038 = vunpack.c.l.b16 %v1724
    %v2039 = vunpack.c.l.b16 %v1725
    %v2040 = vunpack.c.l.b16 %v1726
    %v2041 = vunpack.c.l.b16 %v1727
    %v2042 = vunpack.c.l.b16 %v1728
    %v2043 = vunpack.c.l.b16 %v1729
    %v2044 = vunpack.c.l.b16 %v1730
    %v2045 = vunpack.c.l.b16 %v1731
    %v2046 = vunpack.c.l.b16 %v1732
    %v2047 = vunpack.c.l.b16 %v1733
    %v2048 = vunpack.c.l.b16 %v1734
    %v2049 = vunpack.c.l.b16 %v1735
    %v2050 = vunpack.c.l.b16 %v1736
    %v2051 = vunpack.c.l.b16 %v1737
    %v2052 = vunpack.c.l.b16 %v1738
    %v2053 = vunpack.c.l.b16 %v1739
    %v2054 = vunpack.c.l.b16 %v1740
    %v2055 = vunpack.c.l.b16 %v1741
    %v2056 = vunpack.c.l.b16 %v1742
    %v2057 = vunpack.c.l.b16 %v1743
    %v2058 = vunpack.c.l.b16 %v1744
    %v2059 = vunpack.c.l.b16 %v1745
    %v2060 = vunpack.c.l.b16 %v1746
    %v2061 = vunpack.c.l.b16 %v1747
    %v2062 = vunpack.c.l.b16 %v1748
    %v2063 = vunpack.c.l.b16 %v1749
    %v2064 = vunpack.c.l.b16 %v1750
    %v2065 = vunpack.c.l.b16 %v1751
    %v2066 = vunpack.c.l.b16 %v1752
    %v2067 = vunpack.c.l.b16 %v1753
    %v2068 = vpack.c.b16 %v1941, %v1940
    %v2069 = vpack.c.b16 %v1943, %v1942
    %v2070 = vpack.c.b16 %v1945, %v1944
    %v2071 = vpack.c.b16 %v1947, %v1946
    %v2072 = vpack.c.b16 %v1949, %v1948
    %v2073 = vpack.c.b16 %v1951, %v1950
    %v2074 = vpack.c.b16 %v1953, %v1952
    %v2075 = vpack.c.b16 %v1955, %v1954
    %v2076 = vpack.c.b16 %v1957, %v1956
    %v2077 = vpack.c.b16 %v1959, %v1958
    %v2078 = vpack.c.b16 %v1961, %v1960
    %v2079 = vpack.c.b16 %v1963, %v1962
    %v2080 = vpack.c.b16 %v1965, %v1964
    %v2081 = vpack.c.b16 %v1967, %v1966
    %v2082 = vpack.c.b16 %v1969, %v1968
    %v2083 = vpack.c.b16 %v1971, %v1970
    %v2084 = vpack.c.b16 %v1973, %v1972
    %v2085 = vpack.c.b16 %v1975, %v1974
    %v2086 = vpack.c.b16 %v1977, %v1976
    %v2087 = vpack.c.b16 %v1979, %v1978
    %v2088 = vpack.c.b16 %v1981, %v1980
    %v2089 = vpack.c.b16 %v1983, %v1982
    %v2090 = vpack.c.b16 %v1985, %v1984
    %v2091 = vpack.c.b16 %v1987, %v1986
    %v2092 = vpack.c.b16 %v1989, %v1988
    %v2093 = vpack.c.b16 %v1991, %v1990
    %v2094 = vpack.c.b16 %v1993, %v1992
    %v2095 = vpack.c.b16 %v1995, %v1994
    %v2096 = vpack.c.b16 %v1997, %v1996
    %v2097 = vpack.c.b16 %v1999, %v1998
    %v2098 = vpack.c.b16 %v2001, %v2000
    %v2099 = vpack.c.b16 %v2003, %v2002
    %v2100 = vpack.c.b16 %v2005, %v2004
    %v2101 = vpack.c.b16 %v2007, %v2006
    %v2102 = vpack.c.b16 %v2009, %v2008
    %v2103 = vpack.c.b16 %v2011, %v2010
    %v2104 = vpack.c.b16 %v2013, %v2012
    %v2105 = vpack.c.b16 %v2015, %v2014
    %v2106 = vpack.c.b16 %v2017, %v2016
    %v2107 = vpack.c.b16 %v2019, %v2018
    %v2108 = vpack.c.b16 %v2021, %v2020
    %v2109 = vpack.c.b16 %v2023, %v2022
    %v2110 = vpack.c.b16 %v2025, %v2024
    %v2111 = vpack.c.b16 %v2027, %v2026
    %v2112 = vpack.c.b16 %v2029, %v2028
    %v2113 = vpack.c.b16 %v2031, %v2030
    %v2114 = vpack.c.b16 %v2033, %v2032
    %v2115 = vpack.c.b16 %v2035, %v2034
    %v2116 = vpack.c.b16 %v2037, %v2036
    %v2117 = vpack.c.b16 %v2039, %v2038
    %v2118 = vpack.c.b16 %v2041, %v2040
    %v2119 = vpack.c.b16 %v2043, %v2042
    %v2120 = vpack.c.b16 %v2045, %v2044
    %v2121 = vpack.c.b16 %v2047, %v2046
    %v2122 = vpack.c.b16 %v2049, %v2048
    %v2123 = vpack.c.b16 %v2051, %v2050
    %v2124 = vpack.c.b16 %v2053, %v2052
    %v2125 = vpack.c.b16 %v2055, %v2054
    %v2126 = vpack.c.b16 %v2057, %v2056
    %v2127 = vpack.c.b16 %v2059, %v2058
    %v2128 = vpack.c.b16 %v2061, %v2060
    %v2129 = vpack.c.b16 %v2063, %v2062
    %v2130 = vpack.c.b16 %v2065, %v2064
    %v2131 = vpack.c.b16 %v2067, %v2066
    %2196 = vmatprep.subr.bf16.mxu0 0
    %2197 = vmatpush1.bf16.msra.mxu0 %v2068
    %2198 = vmatprep.subr.bf16.mxu0 0
    %2199 = vmatpush1.bf16.msra.mxu0 %v2069
    %2200 = vmatprep.subr.bf16.mxu0 0
    %2201 = vmatpush1.bf16.msra.mxu0 %v2070
    %2202 = vmatprep.subr.bf16.mxu0 0
    %2203 = vmatpush1.bf16.msra.mxu0 %v2071
    %2204 = vmatprep.subr.bf16.mxu0 0
    %2205 = vmatpush1.bf16.msra.mxu0 %v2072
    %2206 = vmatprep.subr.bf16.mxu0 0
    %2207 = vmatpush1.bf16.msra.mxu0 %v2073
    %2208 = vmatprep.subr.bf16.mxu0 0
    %2209 = vmatpush1.bf16.msra.mxu0 %v2074
    %2210 = vmatprep.subr.bf16.mxu0 0
    %2211 = vmatpush1.bf16.msra.mxu0 %v2075
    %2212 = vmatprep.subr.bf16.mxu0 0
    %2213 = vmatpush1.bf16.msra.mxu0 %v2076
    %2214 = vmatprep.subr.bf16.mxu0 0
    %2215 = vmatpush1.bf16.msra.mxu0 %v2077
    %2216 = vmatprep.subr.bf16.mxu0 0
    %2217 = vmatpush1.bf16.msra.mxu0 %v2078
    %2218 = vmatprep.subr.bf16.mxu0 0
    %2219 = vmatpush1.bf16.msra.mxu0 %v2079
    %2220 = vmatprep.subr.bf16.mxu0 0
    %2221 = vmatpush1.bf16.msra.mxu0 %v2080
    %2222 = vmatprep.subr.bf16.mxu0 0
    %2223 = vmatpush1.bf16.msra.mxu0 %v2081
    %2224 = vmatprep.subr.bf16.mxu0 0
    %2225 = vmatpush1.bf16.msra.mxu0 %v2082
    %2226 = vmatprep.subr.bf16.mxu0 0
    %2227 = vmatpush1.bf16.msra.mxu0 %v2083
    %2228 = vmatprep.mubr.bf16.mxu0 %v1797
    %2229 = vmatmul.mubr.bf16.gmra.mrb[0].mxu0 %v1796
    %v2230 = vpop.f32.mrb[0].mxu0
    %v2231 = vadd.f32 %v1754, %v2230
    %v2232 = vpop.f32.mrb[0].mxu0
    %v2233 = vpop.f32.mrb[0].mxu0
    %v2234 = vpop.f32.mrb[0].mxu0
    %2235 = vdwg.mxu0
    %2236 = vmatprep.subr.bf16.mxu0 0
    %2237 = vmatpush1.bf16.msra.mxu0 %v2084
    %2238 = vmatprep.subr.bf16.mxu0 0
    %2239 = vmatpush1.bf16.msra.mxu0 %v2085
    %2240 = vmatprep.subr.bf16.mxu0 0
    %2241 = vmatpush1.bf16.msra.mxu0 %v2086
    %2242 = vmatprep.subr.bf16.mxu0 0
    %2243 = vmatpush1.bf16.msra.mxu0 %v2087
    %2244 = vmatprep.subr.bf16.mxu0 0
    %2245 = vmatpush1.bf16.msra.mxu0 %v2088
    %2246 = vmatprep.subr.bf16.mxu0 0
    %2247 = vmatpush1.bf16.msra.mxu0 %v2089
    %2248 = vmatprep.subr.bf16.mxu0 0
    %2249 = vmatpush1.bf16.msra.mxu0 %v2090
    %2250 = vmatprep.subr.bf16.mxu0 0
    %2251 = vmatpush1.bf16.msra.mxu0 %v2091
    %2252 = vmatprep.subr.bf16.mxu0 0
    %2253 = vmatpush1.bf16.msra.mxu0 %v2092
    %2254 = vmatprep.subr.bf16.mxu0 0
    %2255 = vmatpush1.bf16.msra.mxu0 %v2093
    %2256 = vmatprep.subr.bf16.mxu0 0
    %2257 = vmatpush1.bf16.msra.mxu0 %v2094
    %2258 = vmatprep.subr.bf16.mxu0 0
    %2259 = vmatpush1.bf16.msra.mxu0 %v2095
    %2260 = vmatprep.subr.bf16.mxu0 0
    %2261 = vmatpush1.bf16.msra.mxu0 %v2096
    %2262 = vmatprep.subr.bf16.mxu0 0
    %2263 = vmatpush1.bf16.msra.mxu0 %v2097
    %2264 = vmatprep.subr.bf16.mxu0 0
    %2265 = vmatpush1.bf16.msra.mxu0 %v2098
    %2266 = vmatprep.subr.bf16.mxu0 0
    %2267 = vmatpush1.bf16.msra.mxu0 %v2099
    %2268 = vmatprep.mubr.bf16.mxu0 %v1799
    %2269 = vmatmul.mubr.bf16.gmra.mrb[0].mxu0 %v1798
    %v2270 = vpop.f32.mrb[0].mxu0
    %v2271 = vadd.f32 %v2231, %v2270
    %v2272 = vpop.f32.mrb[0].mxu0
    %v2273 = vpop.f32.mrb[0].mxu0
    %v2274 = vpop.f32.mrb[0].mxu0
    %2275 = vdwg.mxu0
    %2276 = vmatprep.subr.bf16.mxu0 0
    %2277 = vmatpush1.bf16.msra.mxu0 %v2100
    %2278 = vmatprep.subr.bf16.mxu0 0
    %2279 = vmatpush1.bf16.msra.mxu0 %v2101
    %2280 = vmatprep.subr.bf16.mxu0 0
    %2281 = vmatpush1.bf16.msra.mxu0 %v2102
    %2282 = vmatprep.subr.bf16.mxu0 0
    %2283 = vmatpush1.bf16.msra.mxu0 %v2103
    %2284 = vmatprep.subr.bf16.mxu0 0
    %2285 = vmatpush1.bf16.msra.mxu0 %v2104
    %2286 = vmatprep.subr.bf16.mxu0 0
    %2287 = vmatpush1.bf16.msra.mxu0 %v2105
    %2288 = vmatprep.subr.bf16.mxu0 0
    %2289 = vmatpush1.bf16.msra.mxu0 %v2106
    %2290 = vmatprep.subr.bf16.mxu0 0
    %2291 = vmatpush1.bf16.msra.mxu0 %v2107
    %2292 = vmatprep.subr.bf16.mxu0 0
    %2293 = vmatpush1.bf16.msra.mxu0 %v2108
    %2294 = vmatprep.subr.bf16.mxu0 0
    %2295 = vmatpush1.bf16.msra.mxu0 %v2109
    %2296 = vmatprep.subr.bf16.mxu0 0
    %2297 = vmatpush1.bf16.msra.mxu0 %v2110
    %2298 = vmatprep.subr.bf16.mxu0 0
    %2299 = vmatpush1.bf16.msra.mxu0 %v2111
    %2300 = vmatprep.subr.bf16.mxu0 0
    %2301 = vmatpush1.bf16.msra.mxu0 %v2112
    %2302 = vmatprep.subr.bf16.mxu0 0
    %2303 = vmatpush1.bf16.msra.mxu0 %v2113
    %2304 = vmatprep.subr.bf16.mxu0 0
    %2305 = vmatpush1.bf16.msra.mxu0 %v2114
    %2306 = vmatprep.subr.bf16.mxu0 0
    %2307 = vmatpush1.bf16.msra.mxu0 %v2115
    %2308 = vmatprep.mubr.bf16.mxu0 %v1801
    %2309 = vmatmul.mubr.bf16.gmra.mrb[0].mxu0 %v1800
    %v2310 = vpop.f32.mrb[0].mxu0
    %v2311 = vadd.f32 %v2271, %v2310
    %v2312 = vpop.f32.mrb[0].mxu0
    %v2313 = vpop.f32.mrb[0].mxu0
    %v2314 = vpop.f32.mrb[0].mxu0
    %2315 = vdwg.mxu0
    %2316 = vmatprep.subr.bf16.mxu0 0
    %2317 = vmatpush1.bf16.msra.mxu0 %v2116
    %2318 = vmatprep.subr.bf16.mxu0 0
    %2319 = vmatpush1.bf16.msra.mxu0 %v2117
    %2320 = vmatprep.subr.bf16.mxu0 0
    %2321 = vmatpush1.bf16.msra.mxu0 %v2118
    %2322 = vmatprep.subr.bf16.mxu0 0
    %2323 = vmatpush1.bf16.msra.mxu0 %v2119
    %2324 = vmatprep.subr.bf16.mxu0 0
    %2325 = vmatpush1.bf16.msra.mxu0 %v2120
    %2326 = vmatprep.subr.bf16.mxu0 0
    %2327 = vmatpush1.bf16.msra.mxu0 %v2121
    %2328 = vmatprep.subr.bf16.mxu0 0
    %2329 = vmatpush1.bf16.msra.mxu0 %v2122
    %2330 = vmatprep.subr.bf16.mxu0 0
    %2331 = vmatpush1.bf16.msra.mxu0 %v2123
    %2332 = vmatprep.subr.bf16.mxu0 0
    %2333 = vmatpush1.bf16.msra.mxu0 %v2124
    %2334 = vmatprep.subr.bf16.mxu0 0
    %2335 = vmatpush1.bf16.msra.mxu0 %v2125
    %2336 = vmatprep.subr.bf16.mxu0 0
    %2337 = vmatpush1.bf16.msra.mxu0 %v2126
    %2338 = vmatprep.subr.bf16.mxu0 0
    %2339 = vmatpush1.bf16.msra.mxu0 %v2127
    %2340 = vmatprep.subr.bf16.mxu0 0
    %2341 = vmatpush1.bf16.msra.mxu0 %v2128
    %2342 = vmatprep.subr.bf16.mxu0 0
    %2343 = vmatpush1.bf16.msra.mxu0 %v2129
    %2344 = vmatprep.subr.bf16.mxu0 0
    %2345 = vmatpush1.bf16.msra.mxu0 %v2130
    %2346 = vmatprep.subr.bf16.mxu0 0
    %2347 = vmatpush1.bf16.msra.mxu0 %v2131
    %2348 = vmatprep.mubr.bf16.mxu0 %v1803
    %2349 = vmatmul.mubr.bf16.gmra.mrb[0].mxu0 %v1802
    %v2350 = vpop.f32.mrb[0].mxu0
    %v2351 = vadd.f32 %v2311, %v2350
    %v2352 = vpop.f32.mrb[0].mxu0
    %v2353 = vpop.f32.mrb[0].mxu0
    %v2354 = vpop.f32.mrb[0].mxu0
    %2355 = vdwg.mxu0
    %v2356 = vld [vmem:[#allocation2 + $0x42] ss:$0 sm:$0xff]
    %v2357 = vld [vmem:[#allocation2 + $0x43] ss:$0 sm:$0xff]
    %vm2358 = vcmask 1041408
    %v2359 = vsel %vm2358, %v2351, 0.0
    %v2360 = vrot.slane %v2359, 4
    %v2361 = vadd.f32 %v2359, %v2360
    %v2362 = vrot.slane %v2361, 2
    %v2363 = vadd.f32 %v2361, %v2362
    %v2364 = vrot.slane %v2363, 1
    %v2365 = vadd.f32 %v2363, %v2364
    %v2366 = vrcp.pop 2.0
    %v2367 = vmul.f32 %v2365, %v2366
    %v2368 = vsub.f32 %v2351, %v2367
    %v2369 = vmul.f32 %v2368, %v2368
    %v2370 = vsel %vm2358, %v2369, 0.0
    %v2371 = vrot.slane %v2370, 4
    %v2372 = vadd.f32 %v2370, %v2371
    %v2373 = vrot.slane %v2372, 2
    %v2374 = vadd.f32 %v2372, %v2373
    %v2375 = vrot.slane %v2374, 1
    %v2376 = vadd.f32 %v2374, %v2375
    %v2377 = vmul.f32 %v2376, %v2366
    %v2378 = vadd.f32 %v2377, 1e-05
    %v2379 = vrsqrt.pop %v2378
    %v2380 = vmul.f32 %v2356, %v2379
    %v2381 = vmul.f32 %v2368, %v2380
    %v2382 = vadd.f32 %v2381, %v2357
    %v2383 = vmax.f32 %v2382, 0.0
    %v2384 = vld [vmem:[%s6] sm:$0xff]
    %v2385 = vld [vmem:[%s6 + $0x8] sm:$0xff]
    %v2386 = vld [vmem:[%s6 + $0x10] sm:$0xff]
    %v2387 = vld [vmem:[%s6 + $0x18] sm:$0xff]
    %v2388 = vld [vmem:[%s6 + $0x20] sm:$0xff]
    %v2389 = vld [vmem:[%s6 + $0x28] sm:$0xff]
    %v2390 = vld [vmem:[%s6 + $0x30] sm:$0xff]
    %v2391 = vld [vmem:[%s6 + $0x38] sm:$0xff]
    %v2392 = vld [vmem:[%s6 + $0x40] sm:$0xff]
    %v2393 = vld [vmem:[%s6 + $0x48] sm:$0xff]
    %v2394 = vld [vmem:[%s6 + $0x50] sm:$0xff]
    %v2395 = vld [vmem:[%s6 + $0x58] sm:$0xff]
    %v2396 = vld [vmem:[%s6 + $0x60] sm:$0xff]
    %v2397 = vld [vmem:[%s6 + $0x68] sm:$0xff]
    %v2398 = vld [vmem:[%s6 + $0x70] sm:$0xff]
    %v2399 = vld [vmem:[%s6 + $0x78] sm:$0xff]
    %v2400 = vld [vmem:[#allocation2 + $0x44] ss:$0 sm:$0xff]
    %2401 = vmatprep.subr.mxu0 0.0
    %2402 = vmatpush1.msra.mxu0 %v2384
    %2403 = vmatprep.subr.mxu0 0.0
    %2404 = vmatpush1.msra.mxu0 %v2385
    %2405 = vmatprep.subr.mxu0 0.0
    %2406 = vmatpush1.msra.mxu0 %v2386
    %2407 = vmatprep.subr.mxu0 0.0
    %2408 = vmatpush1.msra.mxu0 %v2387
    %2409 = vmatprep.subr.mxu0 0.0
    %2410 = vmatpush1.msra.mxu0 %v2388
    %2411 = vmatprep.subr.mxu0 0.0
    %2412 = vmatpush1.msra.mxu0 %v2389
    %2413 = vmatprep.subr.mxu0 0.0
    %2414 = vmatpush1.msra.mxu0 %v2390
    %2415 = vmatprep.subr.mxu0 0.0
    %2416 = vmatpush1.msra.mxu0 %v2391
    %2417 = vmatprep.subr.mxu0 0.0
    %2418 = vmatpush1.msra.mxu0 %v2392
    %2419 = vmatprep.subr.mxu0 0.0
    %2420 = vmatpush1.msra.mxu0 %v2393
    %2421 = vmatprep.subr.mxu0 0.0
    %2422 = vmatpush1.msra.mxu0 %v2394
    %2423 = vmatprep.subr.mxu0 0.0
    %2424 = vmatpush1.msra.mxu0 %v2395
    %2425 = vmatprep.subr.mxu0 0.0
    %2426 = vmatpush1.msra.mxu0 %v2396
    %2427 = vmatprep.subr.mxu0 0.0
    %2428 = vmatpush1.msra.mxu0 %v2397
    %2429 = vmatprep.subr.mxu0 0.0
    %2430 = vmatpush1.msra.mxu0 %v2398
    %2431 = vmatprep.subr.mxu0 0.0
    %2432 = vmatpush1.msra.mxu0 %v2399
    %2433 = vmatprep.subr.mxu0 0.0
    %2434 = vmatpush1.msra.mxu0 0.0
    %2435 = vmatprep.subr.mxu0 0.0
    %2436 = vmatpush1.msra.mxu0 0.0
    %2437 = vmatprep.subr.mxu0 0.0
    %2438 = vmatpush1.msra.mxu0 0.0
    %2439 = vmatprep.subr.mxu0 0.0
    %2440 = vmatpush1.msra.mxu0 0.0
    %2441 = vmatprep.subr.mxu0 0.0
    %2442 = vmatpush1.msra.mxu0 0.0
    %2443 = vmatprep.subr.mxu0 0.0
    %2444 = vmatpush1.msra.mxu0 0.0
    %2445 = vmatprep.subr.mxu0 0.0
    %2446 = vmatpush1.msra.mxu0 0.0
    %2447 = vmatprep.subr.mxu0 0.0
    %2448 = vmatpush1.msra.mxu0 0.0
    %2449 = vmatprep.subr.mxu0 0.0
    %2450 = vmatpush1.msra.mxu0 0.0
    %2451 = vmatprep.subr.mxu0 0.0
    %2452 = vmatpush1.msra.mxu0 0.0
    %2453 = vmatprep.subr.mxu0 0.0
    %2454 = vmatpush1.msra.mxu0 0.0
    %2455 = vmatprep.subr.mxu0 0.0
    %2456 = vmatpush1.msra.mxu0 0.0
    %2457 = vmatprep.subr.mxu0 0.0
    %2458 = vmatpush1.msra.mxu0 0.0
    %2459 = vmatprep.subr.mxu0 0.0
    %2460 = vmatpush1.msra.mxu0 0.0
    %2461 = vmatprep.subr.mxu0 0.0
    %2462 = vmatpush1.msra.mxu0 0.0
    %2463 = vmatprep.subr.mxu0 0.0
    %2464 = vmatpush1.msra.mxu0 0.0
    %2465 = vmatprep.mubr.f32.mxu0 0.0
    %2466 = vmatmul.mubr.f32.gmra.mrb[0].mxu0 %v2383
    %v2467 = vpop.f32.mrb[0].mxu0
    %v2468 = vadd.f32 %v2400, %v2467
    %v2469 = vpop.f32.mrb[0].mxu0
    %2470 = vdwg.mxu0
    %v2471 = vld [vmem:[#allocation2 + $0x45] ss:$0 sm:$0xff]
    %v2472 = vld [vmem:[#allocation2 + $0x46] ss:$0 sm:$0xff]
    %v2473 = vsel %vm2358, %v2468, 0.0
    %v2474 = vrot.slane %v2473, 4
    %v2475 = vadd.f32 %v2473, %v2474
    %v2476 = vrot.slane %v2475, 2
    %v2477 = vadd.f32 %v2475, %v2476
    %v2478 = vrot.slane %v2477, 1
    %v2479 = vadd.f32 %v2477, %v2478
    %v2480 = vmul.f32 %v2479, %v2366
    %v2481 = vsub.f32 %v2468, %v2480
    %v2482 = vmul.f32 %v2481, %v2481
    %v2483 = vsel %vm2358, %v2482, 0.0
    %v2484 = vrot.slane %v2483, 4
    %v2485 = vadd.f32 %v2483, %v2484
    %v2486 = vrot.slane %v2485, 2
    %v2487 = vadd.f32 %v2485, %v2486
    %v2488 = vrot.slane %v2487, 1
    %v2489 = vadd.f32 %v2487, %v2488
    %v2490 = vmul.f32 %v2489, %v2366
    %v2491 = vadd.f32 %v2490, 1e-05
    %v2492 = vrsqrt.pop %v2491
    %v2493 = vmul.f32 %v2471, %v2492
    %v2494 = vmul.f32 %v2481, %v2493
    %v2495 = vadd.f32 %v2494, %v2472
    %v2496 = vmax.f32 %v2495, 0.0
    %v2497 = vld [vmem:[%s7] sm:$0xff]
    %v2498 = vld [vmem:[%s7 + $0x8] sm:$0xff]
    %v2499 = vld [vmem:[%s7 + $0x10] sm:$0xff]
    %v2500 = vld [vmem:[%s7 + $0x18] sm:$0xff]
    %v2501 = vld [vmem:[%s7 + $0x20] sm:$0xff]
    %v2502 = vld [vmem:[%s7 + $0x28] sm:$0xff]
    %v2503 = vld [vmem:[%s7 + $0x30] sm:$0xff]
    %v2504 = vld [vmem:[%s7 + $0x38] sm:$0xff]
    %v2505 = vld [vmem:[%s7 + $0x40] sm:$0xff]
    %v2506 = vld [vmem:[%s7 + $0x48] sm:$0xff]
    %v2507 = vld [vmem:[%s7 + $0x50] sm:$0xff]
    %v2508 = vld [vmem:[%s7 + $0x58] sm:$0xff]
    %v2509 = vld [vmem:[%s7 + $0x60] sm:$0xff]
    %v2510 = vld [vmem:[%s7 + $0x68] sm:$0xff]
    %v2511 = vld [vmem:[%s7 + $0x70] sm:$0xff]
    %v2512 = vld [vmem:[%s7 + $0x78] sm:$0xff]
    %v2513 = vld [vmem:[#allocation2 + $0x47] ss:$0 sm:$0xff]
    %2514 = vmatprep.subr.mxu0 0.0
    %2515 = vmatpush1.msra.mxu0 %v2497
    %2516 = vmatprep.subr.mxu0 0.0
    %2517 = vmatpush1.msra.mxu0 %v2498
    %2518 = vmatprep.subr.mxu0 0.0
    %2519 = vmatpush1.msra.mxu0 %v2499
    %2520 = vmatprep.subr.mxu0 0.0
    %2521 = vmatpush1.msra.mxu0 %v2500
    %2522 = vmatprep.subr.mxu0 0.0
    %2523 = vmatpush1.msra.mxu0 %v2501
    %2524 = vmatprep.subr.mxu0 0.0
    %2525 = vmatpush1.msra.mxu0 %v2502
    %2526 = vmatprep.subr.mxu0 0.0
    %2527 = vmatpush1.msra.mxu0 %v2503
    %2528 = vmatprep.subr.mxu0 0.0
    %2529 = vmatpush1.msra.mxu0 %v2504
    %2530 = vmatprep.subr.mxu0 0.0
    %2531 = vmatpush1.msra.mxu0 %v2505
    %2532 = vmatprep.subr.mxu0 0.0
    %2533 = vmatpush1.msra.mxu0 %v2506
    %2534 = vmatprep.subr.mxu0 0.0
    %2535 = vmatpush1.msra.mxu0 %v2507
    %2536 = vmatprep.subr.mxu0 0.0
    %2537 = vmatpush1.msra.mxu0 %v2508
    %2538 = vmatprep.subr.mxu0 0.0
    %2539 = vmatpush1.msra.mxu0 %v2509
    %2540 = vmatprep.subr.mxu0 0.0
    %2541 = vmatpush1.msra.mxu0 %v2510
    %2542 = vmatprep.subr.mxu0 0.0
    %2543 = vmatpush1.msra.mxu0 %v2511
    %2544 = vmatprep.subr.mxu0 0.0
    %2545 = vmatpush1.msra.mxu0 %v2512
    %2546 = vmatprep.subr.mxu0 0.0
    %2547 = vmatpush1.msra.mxu0 0.0
    %2548 = vmatprep.subr.mxu0 0.0
    %2549 = vmatpush1.msra.mxu0 0.0
    %2550 = vmatprep.subr.mxu0 0.0
    %2551 = vmatpush1.msra.mxu0 0.0
    %2552 = vmatprep.subr.mxu0 0.0
    %2553 = vmatpush1.msra.mxu0 0.0
    %2554 = vmatprep.subr.mxu0 0.0
    %2555 = vmatpush1.msra.mxu0 0.0
    %2556 = vmatprep.subr.mxu0 0.0
    %2557 = vmatpush1.msra.mxu0 0.0
    %2558 = vmatprep.subr.mxu0 0.0
    %2559 = vmatpush1.msra.mxu0 0.0
    %2560 = vmatprep.subr.mxu0 0.0
    %2561 = vmatpush1.msra.mxu0 0.0
    %2562 = vmatprep.subr.mxu0 0.0
    %2563 = vmatpush1.msra.mxu0 0.0
    %2564 = vmatprep.subr.mxu0 0.0
    %2565 = vmatpush1.msra.mxu0 0.0
    %2566 = vmatprep.subr.mxu0 0.0
    %2567 = vmatpush1.msra.mxu0 0.0
    %2568 = vmatprep.subr.mxu0 0.0
    %2569 = vmatpush1.msra.mxu0 0.0
    %2570 = vmatprep.subr.mxu0 0.0
    %2571 = vmatpush1.msra.mxu0 0.0
    %2572 = vmatprep.subr.mxu0 0.0
    %2573 = vmatpush1.msra.mxu0 0.0
    %2574 = vmatprep.subr.mxu0 0.0
    %2575 = vmatpush1.msra.mxu0 0.0
    %2576 = vmatprep.subr.mxu0 0.0
    %2577 = vmatpush1.msra.mxu0 0.0
    %2578 = vmatprep.mubr.f32.mxu0 0.0
    %2579 = vmatmul.mubr.f32.gmra.mrb[0].mxu0 %v2496
    %v2580 = vpop.f32.mrb[0].mxu0
    %v2581 = vadd.f32 %v2513, %v2580
    %v2582 = vpop.f32.mrb[0].mxu0
    %2583 = vdwg.mxu0
    %vm2584 = vcmask 66560
    %2585 = vst.msk [vmem:[#allocation8] sm:$0x3] %vm2584, %v2581
    // Predicated region
    $region46: #{tpu_custom_call.1} parent=1 // pred_check
      _
    $region47: #{tpu_custom_call.1} parent=1 // pred_check_branch
      %2587 = sbr.rel (0) target = $region49
    $region48: #{tpu_custom_call.1} parent=1 // pred_region
      %s2589 = ssub.s32 32, 32
      %2590 = vsyncadd [#allocation4], %s2589
      %s2592 = sshll.u32 [#allocation8], 4
      %s2593 = int_to_ptr.vmem [resolvable:$true] %s2592
      %2595 = dma.vmem_to_hbm [thread:$0]  %s2593, 32, %s8, [#allocation4]
    $region49: #{tpu_custom_call.1} parent=1 // pred_fallthru
      _
    // Predicated region
    $region50: #{tpu_custom_call.1} parent=1 // pred_check
      _
    $region51: #{tpu_custom_call.1} parent=1 // pred_check_branch
      %2597 = sbr.rel (0) target = $region53
    $region52: #{tpu_custom_call.1} parent=1 // pred_region
      %2598 = dma.done [#allocation4], 32
    $region53: #{tpu_custom_call.1} parent=1 // pred_fallthru
      _
    %2599 = vsyncpa [#allocation3], 1
    %2600 = vsyncpa [#allocation6], 1
    %2601 = vsyncpa [#allocation4], 1

</llo_original>
